<compile_context>
chip_gen: v7x
topology: tpu7x:2x2x1
jax: 0.10.0
libtpu: 0.0.40
codegen_flags: <defaults>
</compile_context>

<pallas_src>
import functools
import math

import jax
import jax.numpy as jnp
from jax.experimental import pallas as pl
from jax.experimental.pallas import tpu as pltpu


# ----------------------------------------------------------------------------
# Pallas kernel: one full TransformerEncoderLayer per grid step
# (grid step = block of `bt` batch elements).
# ----------------------------------------------------------------------------
def encoder_layer_kernel(
    x_ref,                      # (bt, S, E)  f32 activations for this block
    wq_ref, wk_ref, wv_ref,     # (E, E)      bf16, pre-transposed (x @ W)
    bq_ref, bk_ref, bv_ref,     # (1, E)      f32
    wo_ref,                     # (E, E)      bf16 out-proj
    bo_ref,                     # (1, E)      f32
    w1_ref,                     # (E, FF)     bf16 FFN linear1
    b1_ref,                     # (1, FF)     f32
    w2_ref,                     # (FF, E)     bf16 FFN linear2
    b2_ref,                     # (1, E)      f32
    g1_ref, be1_ref,            # (1, E)      LayerNorm1 gamma / beta
    g2_ref, be2_ref,            # (1, E)      LayerNorm2 gamma / beta
    o_ref,                      # (bt, S, E)  f32 output
    ctx_ref,                    # (bt, S, E)  bf16 VMEM scratch (attn context)
    *,
    n_heads: int,
    heads_per_group: int,
):
    bt, S, E = x_ref.shape
    dh = E // n_heads
    scale = 1.0 / math.sqrt(dh)

    x = x_ref[...]                               # residual stream kept in f32
    x2d = x.reshape(bt * S, E)                   # collapse (bt, S) -> M rows
    x_bf = x2d.astype(jnp.bfloat16)

    # ---- Q/K/V projections: one wide bf16 matmul each, M = bt*S rows --------
    # 1/sqrt(dh) folded into q once (saves a (bt,S,S) multiply per head);
    # q/k/v cast to bf16 once here (they are only ever consumed as bf16).
    q_bf = ((jnp.dot(x_bf, wq_ref[...], preferred_element_type=jnp.float32)
             + bq_ref[...]) * scale).astype(jnp.bfloat16).reshape(bt, S, E)
    k_bf = (jnp.dot(x_bf, wk_ref[...], preferred_element_type=jnp.float32)
            + bk_ref[...]).astype(jnp.bfloat16).reshape(bt, S, E)
    v_bf = (jnp.dot(x_bf, wv_ref[...], preferred_element_type=jnp.float32)
            + bv_ref[...]).astype(jnp.bfloat16).reshape(bt, S, E)

    # ---- causal mask as an additive (S,S) f32 bias (broadcasts over bt) -----
    row = jax.lax.broadcasted_iota(jnp.int32, (S, S), 0)
    col = jax.lax.broadcasted_iota(jnp.int32, (S, S), 1)
    mask_bias = jnp.where(col <= row, 0.0, -1e30).astype(jnp.float32)

    # ---- multi-head self-attention -------------------------------------------
    # Static (unrolled) head loop, heads processed in lane-aligned groups so
    # each ctx store covers a multiple of 128 lanes where dh allows it.
    # Softmax normalization applied AFTER the PV matmul (on (bt,S,dh), not
    # (bt,S,S)); reciprocal on the EUP slot.
    # TODO(synk): flash-style KV tiling for long sequences (the (bt,S,S) score
    # tile grows quadratically and bites first on v7x's 64 MiB VMEM).
    n_groups = n_heads // heads_per_group
    for g in range(n_groups):
        chunks = []
        for hh in range(heads_per_group):
            h = g * heads_per_group + hh
            sl = slice(h * dh, (h + 1) * dh)
            qh = q_bf[:, :, sl]
            kh = k_bf[:, :, sl]
            vh = v_bf[:, :, sl]
            s = jnp.einsum("bqd,bkd->bqk", qh, kh,
                           preferred_element_type=jnp.float32)
            s = s + mask_bias
            m = jnp.max(s, axis=-1, keepdims=True)
            p = jnp.exp(s - m)                            # unnormalized probs
            denom = jnp.sum(p, axis=-1, keepdims=True)
            ctx_h = jnp.einsum("bqk,bkd->bqd", p.astype(jnp.bfloat16), vh,
                               preferred_element_type=jnp.float32)
            ctx_h = ctx_h * pl.reciprocal(denom, approx=True)   # post-PV norm
            chunks.append(ctx_h)
        gsl = slice(g * heads_per_group * dh, (g + 1) * heads_per_group * dh)
        grp = chunks[0] if heads_per_group == 1 else jnp.concatenate(chunks, -1)
        ctx_ref[:, :, gsl] = grp.astype(jnp.bfloat16)

    attn = (jnp.dot(ctx_ref[...].reshape(bt * S, E), wo_ref[...],
                    preferred_element_type=jnp.float32) + bo_ref[...])

    def layer_norm(y, gamma, beta):
        mu = jnp.mean(y, axis=-1, keepdims=True)
        var = jnp.mean((y - mu) ** 2, axis=-1, keepdims=True)
        return (y - mu) * jax.lax.rsqrt(var + 1e-5) * gamma + beta

    # ---- residual + LN1 (post-norm) -------------------------------------------
    x1 = layer_norm(x2d + attn, g1_ref[...], be1_ref[...])

    # ---- feed-forward (ReLU), bf16 matmuls on M = bt*S rows --------------------
    h1 = jnp.maximum(
        jnp.dot(x1.astype(jnp.bfloat16), w1_ref[...],
                preferred_element_type=jnp.float32) + b1_ref[...], 0.0)
    ff = (jnp.dot(h1.astype(jnp.bfloat16), w2_ref[...],
                  preferred_element_type=jnp.float32) + b2_ref[...])

    # ---- residual + LN2 --------------------------------------------------------
    x2 = layer_norm(x1 + ff, g2_ref[...], be2_ref[...])
    o_ref[...] = x2.reshape(bt, S, E).astype(o_ref.dtype)


# ----------------------------------------------------------------------------
# Generation-aware tiling / VMEM budgeting helpers.
# ----------------------------------------------------------------------------
def _vmem_capacity_bytes():
    try:
        return int(pltpu.get_tpu_info().vmem_capacity_bytes)
    except Exception:
        return 64 << 20          # conservative default (v7x per-core VMEM)


def _layer_vmem_bytes(bt, S, E, FF):
    """Rough per-grid-step working-set estimate (bytes)."""
    rows = bt * S
    weights = 2 * 2 * (4 * E * E + 2 * E * FF)   # bf16, double-buffered
    io = 2 * 2 * rows * E * 4                    # x + out f32 blocks, double-buffered
    qkv = 3 * rows * E * 2                       # bf16 q/k/v live across head loop
    ctx = rows * E * 2                           # bf16 ctx scratch
    scores = 2 * bt * S * S * 4                  # per-head f32 scores + exp
    ffn = rows * FF * (4 + 2)                    # h1 f32 + bf16 copy
    resid = 4 * rows * E * 4                     # x / attn / x1 / ff temporaries
    return weights + io + qkv + ctx + scores + ffn + resid


def _choose_batch_block(B, S, E, FF, budget):
    """Largest bt dividing B whose working set fits `budget`, with bt*S capped
    at 1024 rows (MXU M-tile sweet spot / latency); prefer an even grid-step
    count so v7x's two TensorCores stay balanced on the parallel axis."""
    divisors = [d for d in range(1, B + 1) if B % d == 0]
    best = 1
    for bt in divisors:
        if bt > 1 and bt * S > 1024:
            continue
        if bt == 1 or _layer_vmem_bytes(bt, S, E, FF) <= budget:
            best = bt
    steps = B // best
    if steps % 2 == 1 and best > 1:
        for bt2 in sorted(divisors, reverse=True):
            if bt2 < best and (B // bt2) % 2 == 0 and (bt2 * S >= 128 or bt2 == 1):
                best = bt2
                break
    return best


def _heads_per_group(n_heads, dh):
    """Group heads so each ctx store covers a multiple of 128 lanes
    (lane-dense vst instead of vst.msk).  Fall back to per-head stores when no
    aligned grouping exists (e.g. tiny debug shapes with dh < 128)."""
    for cand in range(1, n_heads + 1):
        if n_heads % cand == 0 and (cand * dh) % 128 == 0:
            return cand
    return 1


def run_encoder_layer(xb, lp, n_heads):
    """xb: (B, S, E) float32. Returns (B, S, E) float32."""
    B, S, E = xb.shape
    assert E % n_heads == 0, "emb_size must be divisible by n_heads"
    FF = lp["w1_t"].shape[1]
    dh = E // n_heads

    cap = _vmem_capacity_bytes()
    vmem_limit = max(32 << 20, min(int(cap * 0.75), 96 << 20))
    bt = _choose_batch_block(B, S, E, FF, budget=int(vmem_limit * 0.7))
    grid = (B // bt,)
    hg = _heads_per_group(n_heads, dh)

    rep2 = lambda i: (0, 0)
    kernel = functools.partial(encoder_layer_kernel, n_heads=n_heads,
                               heads_per_group=hg)

    cost = pl.CostEstimate(
        flops=int(2 * B * S * (4 * E * E + 2 * E * FF) + 4 * B * S * S * E),
        transcendentals=int(B * n_heads * S * S + 2 * B * S),
        bytes_accessed=int(2 * (4 * E * E + 2 * E * FF)      # bf16 weights
                           + 4 * (9 * E + FF)                # f32 bias/LN params
                           + 4 * 2 * B * S * E),             # f32 activations in+out
    )

    # NOTE: weight BlockSpecs have constant block indices so each weight is
    # DMA'd once and stays VMEM-resident across grid steps.  They are still
    # double-buffered by default; the VMEM budget above accounts for that.
    return pl.pallas_call(
        kernel,
        out_shape=jax.ShapeDtypeStruct((B, S, E), jnp.float32),
        grid=grid,
        in_specs=[
            pl.BlockSpec((bt, S, E), lambda i: (i, 0, 0)),   # x
            pl.BlockSpec((E, E), rep2),                      # wq
            pl.BlockSpec((E, E), rep2),                      # wk
            pl.BlockSpec((E, E), rep2),                      # wv
            pl.BlockSpec((1, E), rep2),                      # bq
            pl.BlockSpec((1, E), rep2),                      # bk
            pl.BlockSpec((1, E), rep2),                      # bv
            pl.BlockSpec((E, E), rep2),                      # wo
            pl.BlockSpec((1, E), rep2),                      # bo
            pl.BlockSpec((E, FF), rep2),                     # w1
            pl.BlockSpec((1, FF), rep2),                     # b1
            pl.BlockSpec((FF, E), rep2),                     # w2
            pl.BlockSpec((1, E), rep2),                      # b2
            pl.BlockSpec((1, E), rep2),                      # g1
            pl.BlockSpec((1, E), rep2),                      # be1
            pl.BlockSpec((1, E), rep2),                      # g2
            pl.BlockSpec((1, E), rep2),                      # be2
        ],
        out_specs=pl.BlockSpec((bt, S, E), lambda i: (i, 0, 0)),
        scratch_shapes=[pltpu.VMEM((bt, S, E), jnp.bfloat16)],
        compiler_params=pltpu.CompilerParams(
            dimension_semantics=("parallel",),
            vmem_limit_bytes=vmem_limit),
        cost_estimate=cost,
    )(xb, lp["wq_t"], lp["wk_t"], lp["wv_t"], lp["bq"], lp["bk"], lp["bv"],
      lp["wo_t"], lp["bo"], lp["w1_t"], lp["b1"], lp["w2_t"], lp["b2"],
      lp["g1"], lp["be1"], lp["g2"], lp["be2"])


# ----------------------------------------------------------------------------
# Parameter construction (deterministic), positional encoding, full forward.
# ----------------------------------------------------------------------------
def make_positional_embeddings(emb_len, max_len=64):
    position = jnp.arange(max_len, dtype=jnp.float32)[:, None]
    div_scale = jnp.exp(
        jnp.arange(0, emb_len, 2, dtype=jnp.float32)
        * (-math.log(10000.0) / emb_len))
    pe = jnp.zeros((max_len, emb_len), dtype=jnp.float32)
    pe = pe.at[:, 0::2].set(jnp.sin(position * div_scale))
    pe = pe.at[:, 1::2].set(jnp.cos(position * div_scale))
    return pe  # (max_len, E); PyTorch stores (max_len, 1, E) -- broadcast equiv.


def init_params(key, n_tokens, emb_size, ff_size, n_layers):
    E, FF = emb_size, ff_size
    keys = jax.random.split(key, 1 + n_layers)
    params = {
        "emb_table": 0.1 * jax.random.normal(keys[0], (n_tokens, E), jnp.float32),
        "pos_emb": make_positional_embeddings(E),
        "layers": [],
    }
    s = 0.05
    bf16 = jnp.bfloat16
    for l in range(n_layers):
        k = jax.random.split(keys[1 + l], 12)
        # Matmul weights stored pre-transposed (x @ W), pre-split q/k/v, and
        # pre-cast to bf16 ONCE here (no per-forward-call casts -> no extra
        # HBM traffic per layer per call).  Biases / LN params stay f32.
        lp = {
            "wq_t": (s * jax.random.normal(k[0], (E, E), jnp.float32)).astype(bf16),
            "wk_t": (s * jax.random.normal(k[1], (E, E), jnp.float32)).astype(bf16),
            "wv_t": (s * jax.random.normal(k[2], (E, E), jnp.float32)).astype(bf16),
            "bq":   s * jax.random.normal(k[3], (1, E), jnp.float32),
            "bk":   s * jax.random.normal(k[4], (1, E), jnp.float32),
            "bv":   s * jax.random.normal(k[5], (1, E), jnp.float32),
            "wo_t": (s * jax.random.normal(k[6], (E, E), jnp.float32)).astype(bf16),
            "bo":   s * jax.random.normal(k[7], (1, E), jnp.float32),
            "w1_t": (s * jax.random.normal(k[8], (E, FF), jnp.float32)).astype(bf16),
            "b1":   s * jax.random.normal(k[9], (1, FF), jnp.float32),
            "w2_t": (s * jax.random.normal(k[10], (FF, E), jnp.float32)).astype(bf16),
            "b2":   s * jax.random.normal(k[11], (1, E), jnp.float32),
            "g1":  jnp.ones((1, E), jnp.float32),
            "be1": jnp.zeros((1, E), jnp.float32),
            "g2":  jnp.ones((1, E), jnp.float32),
            "be2": jnp.zeros((1, E), jnp.float32),
        }
        params["layers"].append(lp)
    return params


def tf_encoder_forward(tokens, params, n_heads):
    """tokens: (S, B) int32 -> output (S, B, E) float32 (PyTorch convention)."""
    S, B = tokens.shape
    E = params["emb_table"].shape[1]
    # embedding lookup + scale + positional encoding (glue, plain JAX)
    x = params["emb_table"][tokens] * math.sqrt(E)            # (S, B, E)
    x = x + params["pos_emb"][:S][:, None, :]                 # (S, B, E)
    xb = jnp.transpose(x, (1, 0, 2))                          # (B, S, E)
    # TODO(synk): activations are carried between layers in f32 for fidelity
    # with the f32 PyTorch reference; bf16 carry would halve HBM traffic.
    for lp in params["layers"]:
        xb = run_encoder_layer(xb, lp, n_heads)
    return jnp.transpose(xb, (1, 0, 2))                       # (S, B, E)


# ----------------------------------------------------------------------------
# Pure-JAX reference with the same numerical recipe (bf16 matmul operands,
# f32 accumulation, f32 LayerNorm/softmax) for a sanity check.
# ----------------------------------------------------------------------------
def _ref_layer(xb, lp, n_heads):
    B, S, E = xb.shape
    dh = E // n_heads
    scale = 1.0 / math.sqrt(dh)
    bf = lambda a: a.astype(jnp.bfloat16)

    def ln(y, g, b):
        mu = jnp.mean(y, axis=-1, keepdims=True)
        var = jnp.mean((y - mu) ** 2, axis=-1, keepdims=True)
        return (y - mu) * jax.lax.rsqrt(var + 1e-5) * g + b

    x2d = xb.reshape(B * S, E)
    q = (jnp.dot(bf(x2d), bf(lp["wq_t"]), preferred_element_type=jnp.float32)
         + lp["bq"]).reshape(B, S, E)
    k = (jnp.dot(bf(x2d), bf(lp["wk_t"]), preferred_element_type=jnp.float32)
         + lp["bk"]).reshape(B, S, E)
    v = (jnp.dot(bf(x2d), bf(lp["wv_t"]), preferred_element_type=jnp.float32)
         + lp["bv"]).reshape(B, S, E)

    row = jnp.arange(S)[:, None]
    col = jnp.arange(S)[None, :]
    allowed = (col <= row)[None]

    outs = []
    for h in range(n_heads):
        sl = slice(h * dh, (h + 1) * dh)
        s = jnp.einsum("bqd,bkd->bqk", bf(q[:, :, sl]), bf(k[:, :, sl]),
                       preferred_element_type=jnp.float32) * scale
        s = jnp.where(allowed, s, -1e30)
        p = jax.nn.softmax(s, axis=-1)
        outs.append(jnp.einsum("bqk,bkd->bqd", bf(p), bf(v[:, :, sl]),
                               preferred_element_type=jnp.float32))
    attn = jnp.concatenate(outs, -1).reshape(B * S, E)
    attn = (jnp.dot(bf(attn), bf(lp["wo_t"]),
                    preferred_element_type=jnp.float32) + lp["bo"])
    x1 = ln(x2d + attn, lp["g1"], lp["be1"])
    h1 = jnp.maximum(jnp.dot(bf(x1), bf(lp["w1_t"]),
                             preferred_element_type=jnp.float32) + lp["b1"], 0.0)
    ff = (jnp.dot(bf(h1), bf(lp["w2_t"]),
                  preferred_element_type=jnp.float32) + lp["b2"])
    x2 = ln(x1 + ff, lp["g2"], lp["be2"])
    return x2.reshape(B, S, E)


def tf_encoder_reference(tokens, params, n_heads):
    S, B = tokens.shape
    E = params["emb_table"].shape[1]
    x = params["emb_table"][tokens] * math.sqrt(E) + params["pos_emb"][:S][:, None, :]
    xb = jnp.transpose(x, (1, 0, 2))
    for lp in params["layers"]:
        xb = _ref_layer(xb, lp, n_heads)
    return jnp.transpose(xb, (1, 0, 2))


if __name__ == "__main__":
    # Small shapes: n_tokens=16, emb=32, heads=4, ff=64, layers=2, seq=8, batch=2
    n_tokens, emb_size, n_heads, ff_size, n_layers = 16, 32, 4, 64, 2
    S, B = 8, 2

    key = jax.random.PRNGKey(0)
    k_tok, k_par = jax.random.split(key)
    tokens = jax.random.randint(k_tok, (S, B), 0, n_tokens, dtype=jnp.int32)
    params = init_params(k_par, n_tokens, emb_size, ff_size, n_layers)

    out = tf_encoder_forward(tokens, params, n_heads)
    out = jax.block_until_ready(out)
    assert out.shape == (S, B, emb_size)

    ref = jax.block_until_ready(tf_encoder_reference(tokens, params, n_heads))
    assert jnp.allclose(out, ref, atol=1e-2, rtol=1e-2), "mismatch vs JAX reference"

    print("KERNEL_OK")
</pallas_src>

<mosaic_0001>
module attributes {stable_mosaic.version = 11 : i64} {
  func.func @encoder_layer_kernel(%arg0: i32, %arg1: memref<1x8x32xf32, #tpu.memory_space<vmem>>, %arg2: memref<32x32xbf16, #tpu.memory_space<vmem>>, %arg3: memref<32x32xbf16, #tpu.memory_space<vmem>>, %arg4: memref<32x32xbf16, #tpu.memory_space<vmem>>, %arg5: memref<1x32xf32, #tpu.memory_space<vmem>>, %arg6: memref<1x32xf32, #tpu.memory_space<vmem>>, %arg7: memref<1x32xf32, #tpu.memory_space<vmem>>, %arg8: memref<32x32xbf16, #tpu.memory_space<vmem>>, %arg9: memref<1x32xf32, #tpu.memory_space<vmem>>, %arg10: memref<32x64xbf16, #tpu.memory_space<vmem>>, %arg11: memref<1x64xf32, #tpu.memory_space<vmem>>, %arg12: memref<64x32xbf16, #tpu.memory_space<vmem>>, %arg13: memref<1x32xf32, #tpu.memory_space<vmem>>, %arg14: memref<1x32xf32, #tpu.memory_space<vmem>>, %arg15: memref<1x32xf32, #tpu.memory_space<vmem>>, %arg16: memref<1x32xf32, #tpu.memory_space<vmem>>, %arg17: memref<1x32xf32, #tpu.memory_space<vmem>>, %arg18: memref<1x8x32xf32, #tpu.memory_space<vmem>>, %arg19: memref<1x8x32xbf16, #tpu.memory_space<vmem>>) attributes {dimension_semantics = [#tpu.dimension_semantics<parallel>], iteration_bounds = array<i64: 2>, scalar_prefetch = 0 : i64, scratch_operands = 1 : i64, tpu.core_type = #tpu.core_type<tc>, window_params = [{transform_indices = @transform_0, window_bounds = array<i64: 1, 8, 32>}, {pipeline_mode = #tpu.pipeline_mode<synchronous>, transform_indices = @transform_1, window_bounds = array<i64: 32, 32>}, {pipeline_mode = #tpu.pipeline_mode<synchronous>, transform_indices = @transform_2, window_bounds = array<i64: 32, 32>}, {pipeline_mode = #tpu.pipeline_mode<synchronous>, transform_indices = @transform_3, window_bounds = array<i64: 32, 32>}, {pipeline_mode = #tpu.pipeline_mode<synchronous>, transform_indices = @transform_4, window_bounds = array<i64: 1, 32>}, {pipeline_mode = #tpu.pipeline_mode<synchronous>, transform_indices = @transform_5, window_bounds = array<i64: 1, 32>}, {pipeline_mode = #tpu.pipeline_mode<synchronous>, transform_indices = @transform_6, window_bounds = array<i64: 1, 32>}, {pipeline_mode = #tpu.pipeline_mode<synchronous>, transform_indices = @transform_7, window_bounds = array<i64: 32, 32>}, {pipeline_mode = #tpu.pipeline_mode<synchronous>, transform_indices = @transform_8, window_bounds = array<i64: 1, 32>}, {pipeline_mode = #tpu.pipeline_mode<synchronous>, transform_indices = @transform_9, window_bounds = array<i64: 32, 64>}, {pipeline_mode = #tpu.pipeline_mode<synchronous>, transform_indices = @transform_10, window_bounds = array<i64: 1, 64>}, {pipeline_mode = #tpu.pipeline_mode<synchronous>, transform_indices = @transform_11, window_bounds = array<i64: 64, 32>}, {pipeline_mode = #tpu.pipeline_mode<synchronous>, transform_indices = @transform_12, window_bounds = array<i64: 1, 32>}, {pipeline_mode = #tpu.pipeline_mode<synchronous>, transform_indices = @transform_13, window_bounds = array<i64: 1, 32>}, {pipeline_mode = #tpu.pipeline_mode<synchronous>, transform_indices = @transform_14, window_bounds = array<i64: 1, 32>}, {pipeline_mode = #tpu.pipeline_mode<synchronous>, transform_indices = @transform_15, window_bounds = array<i64: 1, 32>}, {pipeline_mode = #tpu.pipeline_mode<synchronous>, transform_indices = @transform_16, window_bounds = array<i64: 1, 32>}, {transform_indices = @transform_17, window_bounds = array<i64: 1, 8, 32>}]} {
    %c0 = arith.constant 0 : index
    %c0_0 = arith.constant 0 : index
    %c0_1 = arith.constant 0 : index
    %0 = vector.load %arg1[%c0, %c0_0, %c0_1] : memref<1x8x32xf32, #tpu.memory_space<vmem>>, vector<1x8x32xf32>
    %1 = vector.shape_cast %0 : vector<1x8x32xf32> to vector<8x32xf32>
    %2 = arith.truncf %1 : vector<8x32xf32> to vector<8x32xbf16>
    %c0_2 = arith.constant 0 : index
    %c0_3 = arith.constant 0 : index
    %3 = vector.load %arg2[%c0_2, %c0_3] : memref<32x32xbf16, #tpu.memory_space<vmem>>, vector<32x32xbf16>
    %cst = arith.constant dense<0.000000e+00> : vector<8x32xf32>
    %4 = tpu.matmul %2, %3, %cst {dimension_numbers = #tpu.dot_dimension_numbers<[1], [0], [0], [1], [0, 0, 1, 1], [], []>} : vector<8x32xbf16>, vector<32x32xbf16>, vector<8x32xf32> -> vector<8x32xf32>
    %c0_4 = arith.constant 0 : index
    %c0_5 = arith.constant 0 : index
    %5 = vector.load %arg5[%c0_4, %c0_5] : memref<1x32xf32, #tpu.memory_space<vmem>>, vector<1x32xf32>
    %6 = vector.broadcast %5 : vector<1x32xf32> to vector<8x32xf32>
    %7 = arith.addf %4, %6 : vector<8x32xf32>
    %cst_6 = arith.constant 0.353553385 : f32
    %8 = vector.broadcast %cst_6 : f32 to vector<8x32xf32>
    %9 = arith.mulf %7, %8 : vector<8x32xf32>
    %10 = arith.truncf %9 : vector<8x32xf32> to vector<8x32xbf16>
    %11 = vector.shape_cast %10 : vector<8x32xbf16> to vector<1x8x32xbf16>
    %c0_7 = arith.constant 0 : index
    %c0_8 = arith.constant 0 : index
    %12 = vector.load %arg3[%c0_7, %c0_8] : memref<32x32xbf16, #tpu.memory_space<vmem>>, vector<32x32xbf16>
    %cst_9 = arith.constant dense<0.000000e+00> : vector<8x32xf32>
    %13 = tpu.matmul %2, %12, %cst_9 {dimension_numbers = #tpu.dot_dimension_numbers<[1], [0], [0], [1], [0, 0, 1, 1], [], []>} : vector<8x32xbf16>, vector<32x32xbf16>, vector<8x32xf32> -> vector<8x32xf32>
    %c0_10 = arith.constant 0 : index
    %c0_11 = arith.constant 0 : index
    %14 = vector.load %arg6[%c0_10, %c0_11] : memref<1x32xf32, #tpu.memory_space<vmem>>, vector<1x32xf32>
    %15 = vector.broadcast %14 : vector<1x32xf32> to vector<8x32xf32>
    %16 = arith.addf %13, %15 : vector<8x32xf32>
    %17 = arith.truncf %16 : vector<8x32xf32> to vector<8x32xbf16>
    %18 = vector.shape_cast %17 : vector<8x32xbf16> to vector<1x8x32xbf16>
    %c0_12 = arith.constant 0 : index
    %c0_13 = arith.constant 0 : index
    %19 = vector.load %arg4[%c0_12, %c0_13] : memref<32x32xbf16, #tpu.memory_space<vmem>>, vector<32x32xbf16>
    %cst_14 = arith.constant dense<0.000000e+00> : vector<8x32xf32>
    %20 = tpu.matmul %2, %19, %cst_14 {dimension_numbers = #tpu.dot_dimension_numbers<[1], [0], [0], [1], [0, 0, 1, 1], [], []>} : vector<8x32xbf16>, vector<32x32xbf16>, vector<8x32xf32> -> vector<8x32xf32>
    %c0_15 = arith.constant 0 : index
    %c0_16 = arith.constant 0 : index
    %21 = vector.load %arg7[%c0_15, %c0_16] : memref<1x32xf32, #tpu.memory_space<vmem>>, vector<1x32xf32>
    %22 = vector.broadcast %21 : vector<1x32xf32> to vector<8x32xf32>
    %23 = arith.addf %20, %22 : vector<8x32xf32>
    %24 = arith.truncf %23 : vector<8x32xf32> to vector<8x32xbf16>
    %25 = vector.shape_cast %24 : vector<8x32xbf16> to vector<1x8x32xbf16>
    %26 = tpu.iota {dimensions = array<i32: 0>} : vector<8x8xi32>
    %27 = tpu.iota {dimensions = array<i32: 1>} : vector<8x8xi32>
    %28 = arith.cmpi sle, %27, %26 : vector<8x8xi32>
    %cst_17 = arith.constant 0.000000e+00 : f32
    %cst_18 = arith.constant -1.000000e+30 : f32
    %29 = vector.broadcast %cst_17 : f32 to vector<8x8xf32>
    %30 = vector.broadcast %cst_18 : f32 to vector<8x8xf32>
    %31 = arith.select %28, %29, %30 : vector<8x8xi1>, vector<8x8xf32>
    %32 = vector.extract_strided_slice %11 {offsets = [0, 0, 0], sizes = [1, 8, 8], strides = [1, 1, 1]} : vector<1x8x32xbf16> to vector<1x8x8xbf16>
    %33 = vector.extract_strided_slice %18 {offsets = [0, 0, 0], sizes = [1, 8, 8], strides = [1, 1, 1]} : vector<1x8x32xbf16> to vector<1x8x8xbf16>
    %34 = vector.extract_strided_slice %25 {offsets = [0, 0, 0], sizes = [1, 8, 8], strides = [1, 1, 1]} : vector<1x8x32xbf16> to vector<1x8x8xbf16>
    "tpu.trace_start"() <{level = 10 : i32, message = "bqd,bkd->bqk"}> : () -> ()
    %cst_19 = arith.constant dense<0.000000e+00> : vector<1x8x8xf32>
    %35 = tpu.matmul %32, %33, %cst_19 {dimension_numbers = #tpu.dot_dimension_numbers<[2], [2], [1], [1], [0, 0, 0, 1, 1, 1], [0], [0]>} : vector<1x8x8xbf16>, vector<1x8x8xbf16>, vector<1x8x8xf32> -> vector<1x8x8xf32>
    "tpu.trace_stop"() : () -> ()
    %36 = vector.shape_cast %31 : vector<8x8xf32> to vector<1x8x8xf32>
    %37 = arith.addf %35, %36 : vector<1x8x8xf32>
    %cst_20 = arith.constant dense<0xFF800000> : vector<1x8xf32>
    %38 = vector.multi_reduction <maximumf>, %37, %cst_20 [2] : vector<1x8x8xf32> to vector<1x8xf32>
    %39 = vector.shape_cast %38 : vector<1x8xf32> to vector<1x8x1xf32>
    %40 = vector.broadcast %39 : vector<1x8x1xf32> to vector<1x8x8xf32>
    %41 = arith.subf %37, %40 : vector<1x8x8xf32>
    %42 = math.exp %41 : vector<1x8x8xf32>
    %cst_21 = arith.constant dense<0.000000e+00> : vector<1x8xf32>
    %43 = vector.multi_reduction <add>, %42, %cst_21 [2] : vector<1x8x8xf32> to vector<1x8xf32>
    %44 = vector.shape_cast %43 : vector<1x8xf32> to vector<1x8x1xf32>
    %45 = arith.truncf %42 : vector<1x8x8xf32> to vector<1x8x8xbf16>
    "tpu.trace_start"() <{level = 10 : i32, message = "bqk,bkd->bqd"}> : () -> ()
    %cst_22 = arith.constant dense<0.000000e+00> : vector<1x8x8xf32>
    %46 = tpu.matmul %45, %34, %cst_22 {dimension_numbers = #tpu.dot_dimension_numbers<[2], [1], [1], [2], [0, 0, 0, 1, 1, 2], [0], [0]>} : vector<1x8x8xbf16>, vector<1x8x8xbf16>, vector<1x8x8xf32> -> vector<1x8x8xf32>
    "tpu.trace_stop"() : () -> ()
    %47 = tpu.reciprocal %44 {approx = true} : vector<1x8x1xf32> -> vector<1x8x1xf32>
    %48 = vector.broadcast %47 : vector<1x8x1xf32> to vector<1x8x8xf32>
    %49 = arith.mulf %46, %48 : vector<1x8x8xf32>
    %50 = arith.truncf %49 : vector<1x8x8xf32> to vector<1x8x8xbf16>
    %c0_23 = arith.constant 0 : index
    %c0_24 = arith.constant 0 : index
    %c0_25 = arith.constant 0 : index
    %51 = vector.load %arg19[%c0_23, %c0_24, %c0_25] : memref<1x8x32xbf16, #tpu.memory_space<vmem>>, vector<1x8x8xbf16>
    tpu.vector_store %arg19[%c0_23, %c0_24, %c0_25], %50 {strides = array<i32>} : memref<1x8x32xbf16, #tpu.memory_space<vmem>>, vector<1x8x8xbf16>,
    %52 = vector.extract_strided_slice %11 {offsets = [0, 0, 8], sizes = [1, 8, 8], strides = [1, 1, 1]} : vector<1x8x32xbf16> to vector<1x8x8xbf16>
    %53 = vector.extract_strided_slice %18 {offsets = [0, 0, 8], sizes = [1, 8, 8], strides = [1, 1, 1]} : vector<1x8x32xbf16> to vector<1x8x8xbf16>
    %54 = vector.extract_strided_slice %25 {offsets = [0, 0, 8], sizes = [1, 8, 8], strides = [1, 1, 1]} : vector<1x8x32xbf16> to vector<1x8x8xbf16>
    "tpu.trace_start"() <{level = 10 : i32, message = "bqd,bkd->bqk"}> : () -> ()
    %cst_26 = arith.constant dense<0.000000e+00> : vector<1x8x8xf32>
    %55 = tpu.matmul %52, %53, %cst_26 {dimension_numbers = #tpu.dot_dimension_numbers<[2], [2], [1], [1], [0, 0, 0, 1, 1, 1], [0], [0]>} : vector<1x8x8xbf16>, vector<1x8x8xbf16>, vector<1x8x8xf32> -> vector<1x8x8xf32>
    "tpu.trace_stop"() : () -> ()
    %56 = vector.shape_cast %31 : vector<8x8xf32> to vector<1x8x8xf32>
    %57 = arith.addf %55, %56 : vector<1x8x8xf32>
    %cst_27 = arith.constant dense<0xFF800000> : vector<1x8xf32>
    %58 = vector.multi_reduction <maximumf>, %57, %cst_27 [2] : vector<1x8x8xf32> to vector<1x8xf32>
    %59 = vector.shape_cast %58 : vector<1x8xf32> to vector<1x8x1xf32>
    %60 = vector.broadcast %59 : vector<1x8x1xf32> to vector<1x8x8xf32>
    %61 = arith.subf %57, %60 : vector<1x8x8xf32>
    %62 = math.exp %61 : vector<1x8x8xf32>
    %cst_28 = arith.constant dense<0.000000e+00> : vector<1x8xf32>
    %63 = vector.multi_reduction <add>, %62, %cst_28 [2] : vector<1x8x8xf32> to vector<1x8xf32>
    %64 = vector.shape_cast %63 : vector<1x8xf32> to vector<1x8x1xf32>
    %65 = arith.truncf %62 : vector<1x8x8xf32> to vector<1x8x8xbf16>
    "tpu.trace_start"() <{level = 10 : i32, message = "bqk,bkd->bqd"}> : () -> ()
    %cst_29 = arith.constant dense<0.000000e+00> : vector<1x8x8xf32>
    %66 = tpu.matmul %65, %54, %cst_29 {dimension_numbers = #tpu.dot_dimension_numbers<[2], [1], [1], [2], [0, 0, 0, 1, 1, 2], [0], [0]>} : vector<1x8x8xbf16>, vector<1x8x8xbf16>, vector<1x8x8xf32> -> vector<1x8x8xf32>
    "tpu.trace_stop"() : () -> ()
    %67 = tpu.reciprocal %64 {approx = true} : vector<1x8x1xf32> -> vector<1x8x1xf32>
    %68 = vector.broadcast %67 : vector<1x8x1xf32> to vector<1x8x8xf32>
    %69 = arith.mulf %66, %68 : vector<1x8x8xf32>
    %70 = arith.truncf %69 : vector<1x8x8xf32> to vector<1x8x8xbf16>
    %c0_30 = arith.constant 0 : index
    %c0_31 = arith.constant 0 : index
    %c8 = arith.constant 8 : index
    %71 = vector.load %arg19[%c0_30, %c0_31, %c8] : memref<1x8x32xbf16, #tpu.memory_space<vmem>>, vector<1x8x8xbf16>
    tpu.vector_store %arg19[%c0_30, %c0_31, %c8], %70 {strides = array<i32>} : memref<1x8x32xbf16, #tpu.memory_space<vmem>>, vector<1x8x8xbf16>,
    %72 = vector.extract_strided_slice %11 {offsets = [0, 0, 16], sizes = [1, 8, 8], strides = [1, 1, 1]} : vector<1x8x32xbf16> to vector<1x8x8xbf16>
    %73 = vector.extract_strided_slice %18 {offsets = [0, 0, 16], sizes = [1, 8, 8], strides = [1, 1, 1]} : vector<1x8x32xbf16> to vector<1x8x8xbf16>
    %74 = vector.extract_strided_slice %25 {offsets = [0, 0, 16], sizes = [1, 8, 8], strides = [1, 1, 1]} : vector<1x8x32xbf16> to vector<1x8x8xbf16>
    "tpu.trace_start"() <{level = 10 : i32, message = "bqd,bkd->bqk"}> : () -> ()
    %cst_32 = arith.constant dense<0.000000e+00> : vector<1x8x8xf32>
    %75 = tpu.matmul %72, %73, %cst_32 {dimension_numbers = #tpu.dot_dimension_numbers<[2], [2], [1], [1], [0, 0, 0, 1, 1, 1], [0], [0]>} : vector<1x8x8xbf16>, vector<1x8x8xbf16>, vector<1x8x8xf32> -> vector<1x8x8xf32>
    "tpu.trace_stop"() : () -> ()
    %76 = vector.shape_cast %31 : vector<8x8xf32> to vector<1x8x8xf32>
    %77 = arith.addf %75, %76 : vector<1x8x8xf32>
    %cst_33 = arith.constant dense<0xFF800000> : vector<1x8xf32>
    %78 = vector.multi_reduction <maximumf>, %77, %cst_33 [2] : vector<1x8x8xf32> to vector<1x8xf32>
    %79 = vector.shape_cast %78 : vector<1x8xf32> to vector<1x8x1xf32>
    %80 = vector.broadcast %79 : vector<1x8x1xf32> to vector<1x8x8xf32>
    %81 = arith.subf %77, %80 : vector<1x8x8xf32>
    %82 = math.exp %81 : vector<1x8x8xf32>
    %cst_34 = arith.constant dense<0.000000e+00> : vector<1x8xf32>
    %83 = vector.multi_reduction <add>, %82, %cst_34 [2] : vector<1x8x8xf32> to vector<1x8xf32>
    %84 = vector.shape_cast %83 : vector<1x8xf32> to vector<1x8x1xf32>
    %85 = arith.truncf %82 : vector<1x8x8xf32> to vector<1x8x8xbf16>
    "tpu.trace_start"() <{level = 10 : i32, message = "bqk,bkd->bqd"}> : () -> ()
    %cst_35 = arith.constant dense<0.000000e+00> : vector<1x8x8xf32>
    %86 = tpu.matmul %85, %74, %cst_35 {dimension_numbers = #tpu.dot_dimension_numbers<[2], [1], [1], [2], [0, 0, 0, 1, 1, 2], [0], [0]>} : vector<1x8x8xbf16>, vector<1x8x8xbf16>, vector<1x8x8xf32> -> vector<1x8x8xf32>
    "tpu.trace_stop"() : () -> ()
    %87 = tpu.reciprocal %84 {approx = true} : vector<1x8x1xf32> -> vector<1x8x1xf32>
    %88 = vector.broadcast %87 : vector<1x8x1xf32> to vector<1x8x8xf32>
    %89 = arith.mulf %86, %88 : vector<1x8x8xf32>
    %90 = arith.truncf %89 : vector<1x8x8xf32> to vector<1x8x8xbf16>
    %c0_36 = arith.constant 0 : index
    %c0_37 = arith.constant 0 : index
    %c16 = arith.constant 16 : index
    %91 = vector.load %arg19[%c0_36, %c0_37, %c16] : memref<1x8x32xbf16, #tpu.memory_space<vmem>>, vector<1x8x8xbf16>
    tpu.vector_store %arg19[%c0_36, %c0_37, %c16], %90 {strides = array<i32>} : memref<1x8x32xbf16, #tpu.memory_space<vmem>>, vector<1x8x8xbf16>,
    %92 = vector.extract_strided_slice %11 {offsets = [0, 0, 24], sizes = [1, 8, 8], strides = [1, 1, 1]} : vector<1x8x32xbf16> to vector<1x8x8xbf16>
    %93 = vector.extract_strided_slice %18 {offsets = [0, 0, 24], sizes = [1, 8, 8], strides = [1, 1, 1]} : vector<1x8x32xbf16> to vector<1x8x8xbf16>
    %94 = vector.extract_strided_slice %25 {offsets = [0, 0, 24], sizes = [1, 8, 8], strides = [1, 1, 1]} : vector<1x8x32xbf16> to vector<1x8x8xbf16>
    "tpu.trace_start"() <{level = 10 : i32, message = "bqd,bkd->bqk"}> : () -> ()
    %cst_38 = arith.constant dense<0.000000e+00> : vector<1x8x8xf32>
    %95 = tpu.matmul %92, %93, %cst_38 {dimension_numbers = #tpu.dot_dimension_numbers<[2], [2], [1], [1], [0, 0, 0, 1, 1, 1], [0], [0]>} : vector<1x8x8xbf16>, vector<1x8x8xbf16>, vector<1x8x8xf32> -> vector<1x8x8xf32>
    "tpu.trace_stop"() : () -> ()
    %96 = vector.shape_cast %31 : vector<8x8xf32> to vector<1x8x8xf32>
    %97 = arith.addf %95, %96 : vector<1x8x8xf32>
    %cst_39 = arith.constant dense<0xFF800000> : vector<1x8xf32>
    %98 = vector.multi_reduction <maximumf>, %97, %cst_39 [2] : vector<1x8x8xf32> to vector<1x8xf32>
    %99 = vector.shape_cast %98 : vector<1x8xf32> to vector<1x8x1xf32>
    %100 = vector.broadcast %99 : vector<1x8x1xf32> to vector<1x8x8xf32>
    %101 = arith.subf %97, %100 : vector<1x8x8xf32>
    %102 = math.exp %101 : vector<1x8x8xf32>
    %cst_40 = arith.constant dense<0.000000e+00> : vector<1x8xf32>
    %103 = vector.multi_reduction <add>, %102, %cst_40 [2] : vector<1x8x8xf32> to vector<1x8xf32>
    %104 = vector.shape_cast %103 : vector<1x8xf32> to vector<1x8x1xf32>
    %105 = arith.truncf %102 : vector<1x8x8xf32> to vector<1x8x8xbf16>
    "tpu.trace_start"() <{level = 10 : i32, message = "bqk,bkd->bqd"}> : () -> ()
    %cst_41 = arith.constant dense<0.000000e+00> : vector<1x8x8xf32>
    %106 = tpu.matmul %105, %94, %cst_41 {dimension_numbers = #tpu.dot_dimension_numbers<[2], [1], [1], [2], [0, 0, 0, 1, 1, 2], [0], [0]>} : vector<1x8x8xbf16>, vector<1x8x8xbf16>, vector<1x8x8xf32> -> vector<1x8x8xf32>
    "tpu.trace_stop"() : () -> ()
    %107 = tpu.reciprocal %104 {approx = true} : vector<1x8x1xf32> -> vector<1x8x1xf32>
    %108 = vector.broadcast %107 : vector<1x8x1xf32> to vector<1x8x8xf32>
    %109 = arith.mulf %106, %108 : vector<1x8x8xf32>
    %110 = arith.truncf %109 : vector<1x8x8xf32> to vector<1x8x8xbf16>
    %c0_42 = arith.constant 0 : index
    %c0_43 = arith.constant 0 : index
    %c24 = arith.constant 24 : index
    %111 = vector.load %arg19[%c0_42, %c0_43, %c24] : memref<1x8x32xbf16, #tpu.memory_space<vmem>>, vector<1x8x8xbf16>
    tpu.vector_store %arg19[%c0_42, %c0_43, %c24], %110 {strides = array<i32>} : memref<1x8x32xbf16, #tpu.memory_space<vmem>>, vector<1x8x8xbf16>,
    %c0_44 = arith.constant 0 : index
    %c0_45 = arith.constant 0 : index
    %c0_46 = arith.constant 0 : index
    %112 = vector.load %arg19[%c0_44, %c0_45, %c0_46] : memref<1x8x32xbf16, #tpu.memory_space<vmem>>, vector<1x8x32xbf16>
    %113 = vector.shape_cast %112 : vector<1x8x32xbf16> to vector<8x32xbf16>
    %c0_47 = arith.constant 0 : index
    %c0_48 = arith.constant 0 : index
    %114 = vector.load %arg8[%c0_47, %c0_48] : memref<32x32xbf16, #tpu.memory_space<vmem>>, vector<32x32xbf16>
    %cst_49 = arith.constant dense<0.000000e+00> : vector<8x32xf32>
    %115 = tpu.matmul %113, %114, %cst_49 {dimension_numbers = #tpu.dot_dimension_numbers<[1], [0], [0], [1], [0, 0, 1, 1], [], []>} : vector<8x32xbf16>, vector<32x32xbf16>, vector<8x32xf32> -> vector<8x32xf32>
    %c0_50 = arith.constant 0 : index
    %c0_51 = arith.constant 0 : index
    %116 = vector.load %arg9[%c0_50, %c0_51] : memref<1x32xf32, #tpu.memory_space<vmem>>, vector<1x32xf32>
    %117 = vector.broadcast %116 : vector<1x32xf32> to vector<8x32xf32>
    %118 = arith.addf %115, %117 : vector<8x32xf32>
    %119 = arith.addf %1, %118 : vector<8x32xf32>
    %c0_52 = arith.constant 0 : index
    %c0_53 = arith.constant 0 : index
    %120 = vector.load %arg14[%c0_52, %c0_53] : memref<1x32xf32, #tpu.memory_space<vmem>>, vector<1x32xf32>
    %c0_54 = arith.constant 0 : index
    %c0_55 = arith.constant 0 : index
    %121 = vector.load %arg15[%c0_54, %c0_55] : memref<1x32xf32, #tpu.memory_space<vmem>>, vector<1x32xf32>
    %cst_56 = arith.constant dense<0.000000e+00> : vector<8xf32>
    %122 = vector.multi_reduction <add>, %119, %cst_56 [1] : vector<8x32xf32> to vector<8xf32>
    %123 = vector.shape_cast %122 : vector<8xf32> to vector<8x1xf32>
    %cst_57 = arith.constant 3.200000e+01 : f32
    %124 = vector.broadcast %cst_57 : f32 to vector<8x1xf32>
    %125 = arith.divf %123, %124 : vector<8x1xf32>
    %126 = vector.broadcast %125 : vector<8x1xf32> to vector<8x32xf32>
    %127 = arith.subf %119, %126 : vector<8x32xf32>
    %128 = arith.mulf %127, %127 : vector<8x32xf32>
    %cst_58 = arith.constant dense<0.000000e+00> : vector<8xf32>
    %129 = vector.multi_reduction <add>, %128, %cst_58 [1] : vector<8x32xf32> to vector<8xf32>
    %130 = vector.shape_cast %129 : vector<8xf32> to vector<8x1xf32>
    %cst_59 = arith.constant 3.200000e+01 : f32
    %131 = vector.broadcast %cst_59 : f32 to vector<8x1xf32>
    %132 = arith.divf %130, %131 : vector<8x1xf32>
    %133 = vector.broadcast %125 : vector<8x1xf32> to vector<8x32xf32>
    %134 = arith.subf %119, %133 : vector<8x32xf32>
    %cst_60 = arith.constant 9.99999974E-6 : f32
    %135 = vector.broadcast %cst_60 : f32 to vector<8x1xf32>
    %136 = arith.addf %132, %135 : vector<8x1xf32>
    %137 = math.rsqrt %136 : vector<8x1xf32>
    %138 = vector.broadcast %137 : vector<8x1xf32> to vector<8x32xf32>
    %139 = arith.mulf %134, %138 : vector<8x32xf32>
    %140 = vector.broadcast %120 : vector<1x32xf32> to vector<8x32xf32>
    %141 = arith.mulf %139, %140 : vector<8x32xf32>
    %142 = vector.broadcast %121 : vector<1x32xf32> to vector<8x32xf32>
    %143 = arith.addf %141, %142 : vector<8x32xf32>
    %144 = arith.truncf %143 : vector<8x32xf32> to vector<8x32xbf16>
    %c0_61 = arith.constant 0 : index
    %c0_62 = arith.constant 0 : index
    %145 = vector.load %arg10[%c0_61, %c0_62] : memref<32x64xbf16, #tpu.memory_space<vmem>>, vector<32x64xbf16>
    %cst_63 = arith.constant dense<0.000000e+00> : vector<8x64xf32>
    %146 = tpu.matmul %144, %145, %cst_63 {dimension_numbers = #tpu.dot_dimension_numbers<[1], [0], [0], [1], [0, 0, 1, 1], [], []>} : vector<8x32xbf16>, vector<32x64xbf16>, vector<8x64xf32> -> vector<8x64xf32>
    %c0_64 = arith.constant 0 : index
    %c0_65 = arith.constant 0 : index
    %147 = vector.load %arg11[%c0_64, %c0_65] : memref<1x64xf32, #tpu.memory_space<vmem>>, vector<1x64xf32>
    %148 = vector.broadcast %147 : vector<1x64xf32> to vector<8x64xf32>
    %149 = arith.addf %146, %148 : vector<8x64xf32>
    %cst_66 = arith.constant 0.000000e+00 : f32
    %150 = vector.broadcast %cst_66 : f32 to vector<8x64xf32>
    %151 = arith.maximumf %149, %150 : vector<8x64xf32>
    %152 = arith.truncf %151 : vector<8x64xf32> to vector<8x64xbf16>
    %c0_67 = arith.constant 0 : index
    %c0_68 = arith.constant 0 : index
    %153 = vector.load %arg12[%c0_67, %c0_68] : memref<64x32xbf16, #tpu.memory_space<vmem>>, vector<64x32xbf16>
    %cst_69 = arith.constant dense<0.000000e+00> : vector<8x32xf32>
    %154 = tpu.matmul %152, %153, %cst_69 {dimension_numbers = #tpu.dot_dimension_numbers<[1], [0], [0], [1], [0, 0, 1, 1], [], []>} : vector<8x64xbf16>, vector<64x32xbf16>, vector<8x32xf32> -> vector<8x32xf32>
    %c0_70 = arith.constant 0 : index
    %c0_71 = arith.constant 0 : index
    %155 = vector.load %arg13[%c0_70, %c0_71] : memref<1x32xf32, #tpu.memory_space<vmem>>, vector<1x32xf32>
    %156 = vector.broadcast %155 : vector<1x32xf32> to vector<8x32xf32>
    %157 = arith.addf %154, %156 : vector<8x32xf32>
    %158 = arith.addf %143, %157 : vector<8x32xf32>
    %c0_72 = arith.constant 0 : index
    %c0_73 = arith.constant 0 : index
    %159 = vector.load %arg16[%c0_72, %c0_73] : memref<1x32xf32, #tpu.memory_space<vmem>>, vector<1x32xf32>
    %c0_74 = arith.constant 0 : index
    %c0_75 = arith.constant 0 : index
    %160 = vector.load %arg17[%c0_74, %c0_75] : memref<1x32xf32, #tpu.memory_space<vmem>>, vector<1x32xf32>
    %cst_76 = arith.constant dense<0.000000e+00> : vector<8xf32>
    %161 = vector.multi_reduction <add>, %158, %cst_76 [1] : vector<8x32xf32> to vector<8xf32>
    %162 = vector.shape_cast %161 : vector<8xf32> to vector<8x1xf32>
    %cst_77 = arith.constant 3.200000e+01 : f32
    %163 = vector.broadcast %cst_77 : f32 to vector<8x1xf32>
    %164 = arith.divf %162, %163 : vector<8x1xf32>
    %165 = vector.broadcast %164 : vector<8x1xf32> to vector<8x32xf32>
    %166 = arith.subf %158, %165 : vector<8x32xf32>
    %167 = arith.mulf %166, %166 : vector<8x32xf32>
    %cst_78 = arith.constant dense<0.000000e+00> : vector<8xf32>
    %168 = vector.multi_reduction <add>, %167, %cst_78 [1] : vector<8x32xf32> to vector<8xf32>
    %169 = vector.shape_cast %168 : vector<8xf32> to vector<8x1xf32>
    %cst_79 = arith.constant 3.200000e+01 : f32
    %170 = vector.broadcast %cst_79 : f32 to vector<8x1xf32>
    %171 = arith.divf %169, %170 : vector<8x1xf32>
    %172 = vector.broadcast %164 : vector<8x1xf32> to vector<8x32xf32>
    %173 = arith.subf %158, %172 : vector<8x32xf32>
    %cst_80 = arith.constant 9.99999974E-6 : f32
    %174 = vector.broadcast %cst_80 : f32 to vector<8x1xf32>
    %175 = arith.addf %171, %174 : vector<8x1xf32>
    %176 = math.rsqrt %175 : vector<8x1xf32>
    %177 = vector.broadcast %176 : vector<8x1xf32> to vector<8x32xf32>
    %178 = arith.mulf %173, %177 : vector<8x32xf32>
    %179 = vector.broadcast %159 : vector<1x32xf32> to vector<8x32xf32>
    %180 = arith.mulf %178, %179 : vector<8x32xf32>
    %181 = vector.broadcast %160 : vector<1x32xf32> to vector<8x32xf32>
    %182 = arith.addf %180, %181 : vector<8x32xf32>
    %183 = vector.shape_cast %182 : vector<8x32xf32> to vector<1x8x32xf32>
    %c0_81 = arith.constant 0 : index
    %c0_82 = arith.constant 0 : index
    %c0_83 = arith.constant 0 : index
    %184 = vector.load %arg18[%c0_81, %c0_82, %c0_83] : memref<1x8x32xf32, #tpu.memory_space<vmem>>, vector<1x8x32xf32>
    tpu.vector_store %arg18[%c0_81, %c0_82, %c0_83], %183 {strides = array<i32>} : memref<1x8x32xf32, #tpu.memory_space<vmem>>, vector<1x8x32xf32>,
    return
  }
  func.func @transform_0(%arg0: i32) -> (i32, i32, i32) {
    %c0_i32 = arith.constant 0 : i32
    %c0_i32_0 = arith.constant 0 : i32
    %c0_i32_1 = arith.constant 0 : i32
    return %arg0, %c0_i32, %c0_i32_0 : i32, i32, i32
  }
  func.func @transform_1(%arg0: i32) -> (i32, i32) {
    %c0_i32 = arith.constant 0 : i32
    %c0_i32_0 = arith.constant 0 : i32
    %c0_i32_1 = arith.constant 0 : i32
    return %c0_i32, %c0_i32_0 : i32, i32
  }
  func.func @transform_2(%arg0: i32) -> (i32, i32) {
    %c0_i32 = arith.constant 0 : i32
    %c0_i32_0 = arith.constant 0 : i32
    %c0_i32_1 = arith.constant 0 : i32
    return %c0_i32, %c0_i32_0 : i32, i32
  }
  func.func @transform_3(%arg0: i32) -> (i32, i32) {
    %c0_i32 = arith.constant 0 : i32
    %c0_i32_0 = arith.constant 0 : i32
    %c0_i32_1 = arith.constant 0 : i32
    return %c0_i32, %c0_i32_0 : i32, i32
  }
  func.func @transform_4(%arg0: i32) -> (i32, i32) {
    %c0_i32 = arith.constant 0 : i32
    %c0_i32_0 = arith.constant 0 : i32
    %c0_i32_1 = arith.constant 0 : i32
    return %c0_i32, %c0_i32_0 : i32, i32
  }
  func.func @transform_5(%arg0: i32) -> (i32, i32) {
    %c0_i32 = arith.constant 0 : i32
    %c0_i32_0 = arith.constant 0 : i32
    %c0_i32_1 = arith.constant 0 : i32
    return %c0_i32, %c0_i32_0 : i32, i32
  }
  func.func @transform_6(%arg0: i32) -> (i32, i32) {
    %c0_i32 = arith.constant 0 : i32
    %c0_i32_0 = arith.constant 0 : i32
    %c0_i32_1 = arith.constant 0 : i32
    return %c0_i32, %c0_i32_0 : i32, i32
  }
  func.func @transform_7(%arg0: i32) -> (i32, i32) {
    %c0_i32 = arith.constant 0 : i32
    %c0_i32_0 = arith.constant 0 : i32
    %c0_i32_1 = arith.constant 0 : i32
    return %c0_i32, %c0_i32_0 : i32, i32
  }
  func.func @transform_8(%arg0: i32) -> (i32, i32) {
    %c0_i32 = arith.constant 0 : i32
    %c0_i32_0 = arith.constant 0 : i32
    %c0_i32_1 = arith.constant 0 : i32
    return %c0_i32, %c0_i32_0 : i32, i32
  }
  func.func @transform_9(%arg0: i32) -> (i32, i32) {
    %c0_i32 = arith.constant 0 : i32
    %c0_i32_0 = arith.constant 0 : i32
    %c0_i32_1 = arith.constant 0 : i32
    return %c0_i32, %c0_i32_0 : i32, i32
  }
  func.func @transform_10(%arg0: i32) -> (i32, i32) {
    %c0_i32 = arith.constant 0 : i32
    %c0_i32_0 = arith.constant 0 : i32
    %c0_i32_1 = arith.constant 0 : i32
    return %c0_i32, %c0_i32_0 : i32, i32
  }
  func.func @transform_11(%arg0: i32) -> (i32, i32) {
    %c0_i32 = arith.constant 0 : i32
    %c0_i32_0 = arith.constant 0 : i32
    %c0_i32_1 = arith.constant 0 : i32
    return %c0_i32, %c0_i32_0 : i32, i32
  }
  func.func @transform_12(%arg0: i32) -> (i32, i32) {
    %c0_i32 = arith.constant 0 : i32
    %c0_i32_0 = arith.constant 0 : i32
    %c0_i32_1 = arith.constant 0 : i32
    return %c0_i32, %c0_i32_0 : i32, i32
  }
  func.func @transform_13(%arg0: i32) -> (i32, i32) {
    %c0_i32 = arith.constant 0 : i32
    %c0_i32_0 = arith.constant 0 : i32
    %c0_i32_1 = arith.constant 0 : i32
    return %c0_i32, %c0_i32_0 : i32, i32
  }
  func.func @transform_14(%arg0: i32) -> (i32, i32) {
    %c0_i32 = arith.constant 0 : i32
    %c0_i32_0 = arith.constant 0 : i32
    %c0_i32_1 = arith.constant 0 : i32
    return %c0_i32, %c0_i32_0 : i32, i32
  }
  func.func @transform_15(%arg0: i32) -> (i32, i32) {
    %c0_i32 = arith.constant 0 : i32
    %c0_i32_0 = arith.constant 0 : i32
    %c0_i32_1 = arith.constant 0 : i32
    return %c0_i32, %c0_i32_0 : i32, i32
  }
  func.func @transform_16(%arg0: i32) -> (i32, i32) {
    %c0_i32 = arith.constant 0 : i32
    %c0_i32_0 = arith.constant 0 : i32
    %c0_i32_1 = arith.constant 0 : i32
    return %c0_i32, %c0_i32_0 : i32, i32
  }
  func.func @transform_17(%arg0: i32) -> (i32, i32, i32) {
    %c0_i32 = arith.constant 0 : i32
    %c0_i32_0 = arith.constant 0 : i32
    %c0_i32_1 = arith.constant 0 : i32
    return %arg0, %c0_i32, %c0_i32_0 : i32, i32, i32
  }
}

</mosaic_0001>

<llo_original>
// kernel: tpu_custom_call.1
$region0: #{tpu_custom_call.1}
  #allocation0 [shape = 'u32[]', space=smem, size = 0x4, offset = 0x4, fixed_abs, tag = 'smem constant byte address 0x4 - core index']
  #allocation1 [shape = 'u32[144,128]{1,0:T(1,128)}', space=vmem, size = 0x12000, scoped, tag = 'internal scratch']
  #allocation2 [shape = 'bf16[1,8,32]{2,1,0:T(8,128)(2,1)}', space=vmem, size = 0x800, scoped, tag = 'scratch operand']
  %s0 = inlined_call_operand.vmem [shape: f32[2,8,32], index: 0, kind: input, shape index: {}]
  %s1 = inlined_call_operand.vmem [shape: bf16[32,32], index: 1, kind: input, shape index: {}]
  %s2 = inlined_call_operand.vmem [shape: bf16[32,32], index: 2, kind: input, shape index: {}]
  %s3 = inlined_call_operand.hbm [shape: bf16[32,32], index: 3, kind: input, shape index: {}]
  %s4 = inlined_call_operand.vmem [shape: f32[1,32], index: 4, kind: input, shape index: {}]
  %s5 = inlined_call_operand.vmem [shape: f32[1,32], index: 5, kind: input, shape index: {}]
  %s6 = inlined_call_operand.hbm [shape: f32[1,32], index: 6, kind: input, shape index: {}]
  %s7 = inlined_call_operand.hbm [shape: bf16[32,32], index: 7, kind: input, shape index: {}]
  %s8 = inlined_call_operand.hbm [shape: f32[1,32], index: 8, kind: input, shape index: {}]
  %s9 = inlined_call_operand.vmem [shape: bf16[32,64], index: 9, kind: input, shape index: {}]
  %s10 = inlined_call_operand.vmem [shape: f32[1,64], index: 10, kind: input, shape index: {}]
  %s11 = inlined_call_operand.vmem [shape: bf16[64,32], index: 11, kind: input, shape index: {}]
  %s12 = inlined_call_operand.vmem [shape: f32[1,32], index: 12, kind: input, shape index: {}]
  %s13 = inlined_call_operand.vmem [shape: f32[1,32], index: 13, kind: input, shape index: {}]
  %s14 = inlined_call_operand.vmem [shape: f32[1,32], index: 14, kind: input, shape index: {}]
  %s15 = inlined_call_operand.vmem [shape: f32[1,32], index: 15, kind: input, shape index: {}]
  %s16 = inlined_call_operand.vmem [shape: f32[1,32], index: 16, kind: input, shape index: {}]
  %s17 = inlined_call_operand.hbm [shape: f32[2,8,32], index: 17, kind: output, shape index: {}]
  %s18 = sld [smem:[#allocation0]]
  $region117: #{tpu_custom_call.1} parent=0
    _
  %s20 = ssub.s32 1, %s18
  %s21 = scalar_select 0, %s20, %s18
  $region1: #{tpu_custom_call.1} parent=0
    #allocation3 [shape = 'u8[8192]{0}', space=vmem, size = 0x2000, scoped, tag = 'input window, operand 3, single buffered']
    #allocation4 [shape = 's32[2]{0}', space=sflag, size = 0x8, scoped, tag = 'scoped memory for tpu_custom_call.1']
    #allocation5 [shape = 's32[2]{0}', space=sflag, size = 0x8, scoped, tag = 'scoped memory for tpu_custom_call.1']
    #allocation6 [shape = 'u8[512]{0}', space=vmem, size = 0x400, scoped, tag = 'input window, operand 6, single buffered']
    #allocation7 [shape = 's32[1]{0}', space=sflag, size = 0x4, scoped, tag = 'scoped memory for tpu_custom_call.1']
    #allocation8 [shape = 'u8[8192]{0}', space=vmem, size = 0x2000, scoped, tag = 'input window, operand 7, single buffered']
    #allocation9 [shape = 'u8[512]{0}', space=vmem, size = 0x400, scoped, tag = 'input window, operand 8, single buffered']
    #allocation10 [shape = 's32[1]{0}', space=sflag, size = 0x4, scoped, tag = 'scoped memory for tpu_custom_call.1']
    #allocation11 [shape = 'u8[8192]{0}', space=vmem, size = 0x2000, scoped, tag = 'output window, operand 0']
    %22 = vsyncpa [#allocation4], 0
    %23 = vsyncpa [#allocation7], 0
    %24 = vsyncpa [#allocation10], 0
    %25 = vsyncpa [#allocation5], 0
    %s26 = scalar_lea.sflag [#allocation5], 1
    %27 = vsyncpa %s26, 0
    loop: start=0, step=1, limit=4
    $region2: #{tpu_custom_call.1} parent=1 // loop_pre_header
      _
    $region3: #{tpu_custom_call.1} parent=1 // loop_header
      %s29 = sphi 0, %s33
      %p30 = scmp.ge.s32.totalorder %s29, 4
      %s39 = sphi 0, %s41
      %s42 = sphi 0, %s39
      %s43 = sphi 0, %s42
      %s59 = sphi 0, %s43
      %s63 = sphi 0, %s63
      %s65 = sphi 0, %s63
      %s66 = sphi 0, %s65
      %s80 = sphi 0, %s66
      %s84 = sphi 0, %s84
      %s86 = sphi 0, %s84
      %s87 = sphi 0, %s86
      %s101 = sphi 0, %s87
      %s105 = sphi 0, %s105
      %s107 = sphi 0, %s105
      %s108 = sphi 0, %s107
      %s122 = sphi 0, %s108
      %s126 = sphi 0, %s126
      %s128 = sphi 0, %s126
      %s129 = sphi 0, %s128
      %s143 = sphi 0, %s129
      %s147 = sphi 0, %s147
      %s149 = sphi 0, %s147
      %s150 = sphi 0, %s149
      %s164 = sphi 0, %s150
      %s168 = sphi 0, %s168
      %s170 = sphi 0, %s168
      %s171 = sphi 0, %s170
      %s185 = sphi 0, %s171
      %s189 = sphi 0, %s189
      %s191 = sphi 0, %s189
      %s192 = sphi 0, %s191
      %s206 = sphi 0, %s192
      %s210 = sphi 0, %s210
      %s212 = sphi 0, %s210
      %s213 = sphi 0, %s212
      %s227 = sphi 0, %s213
      %s231 = sphi 0, %s231
      %s233 = sphi 0, %s231
      %s234 = sphi 0, %s233
      %s248 = sphi 0, %s234
      %s252 = sphi 0, %s252
      %s254 = sphi 0, %s252
      %s255 = sphi 0, %s254
      %s269 = sphi 0, %s255
      %s273 = sphi 0, %s273
      %s275 = sphi 0, %s273
      %s276 = sphi 0, %s275
      %s290 = sphi 0, %s276
      %s294 = sphi 0, %s294
      %s296 = sphi 0, %s294
      %s297 = sphi 0, %s296
      %s311 = sphi 0, %s297
      %s315 = sphi 0, %s315
      %s317 = sphi 0, %s315
      %s318 = sphi 0, %s317
      %s332 = sphi 0, %s318
      %s336 = sphi 0, %s336
      %s338 = sphi 0, %s336
      %s339 = sphi 0, %s338
      %s353 = sphi 0, %s339
      %s357 = sphi 0, %s357
      %s359 = sphi 0, %s357
      %s360 = sphi 0, %s359
      %s374 = sphi 0, %s360
      %s378 = sphi 0, %s378
      %s380 = sphi 0, %s378
      %s381 = sphi 0, %s380
      %s395 = sphi 0, %s381
      %s401 = sphi 0, %s403
      %s404 = sphi 0, %s401
      %s405 = sphi 0, %s404
      %s421 = sphi 0, %s405
    $region4: #{tpu_custom_call.1} parent=1 // loop_header_branch
      %32 = sbr.rel (%p30) target = $region8
    $region5: #{tpu_custom_call.1} parent=1 // loop_body
      %s34 = ssub.s32 %s29, 1
      %s35 = ssub.s32 %s29, 2
      %s36 = sadd.s32 %s29, 1
      %s37 = ssub.s32 %s29, %s36
      %p38 = scmp.eq.s32.totalorder %s37, 0
      %s40 = sadd.s32 %s39, 1
      %s41 = scalar_select %p38, %s39, %s40
      %p44 = pneg %p38
      %p45 = scmp.eq.s32.totalorder %s29, 1
      %p46 = por %p44, %p45
      %p47 = scmp.ne.s32.totalorder %s39, %s42
      %p48 = scmp.eq.s32.totalorder %s29, 0
      %p49 = por %p47, %p48
      %p50 = scmp.ne.s32.totalorder %s39, %s42
      %p51 = scmp.eq.s32.totalorder %s34, 1
      %p52 = por %p50, %p51
      %p53 = scmp.ne.s32.totalorder %s42, %s43
      %p54 = scmp.eq.s32.totalorder %s34, 0
      %p55 = por %p53, %p54
      %p56 = scmp.ne.s32.totalorder %s42, %s43
      %p57 = scmp.eq.s32.totalorder %s35, 1
      %p58 = por %p56, %p57
      %p60 = scmp.ne.s32.totalorder %s43, %s59
      %p61 = scmp.eq.s32.totalorder %s35, 0
      %p62 = por %p60, %p61
      %s64 = sadd.s32 %s63, 1
      %p67 = scmp.eq.s32.totalorder %s29, 1
      %p68 = scmp.ne.s32.totalorder %s63, %s65
      %p69 = scmp.eq.s32.totalorder %s29, 0
      %p70 = por %p68, %p69
      %p71 = scmp.ne.s32.totalorder %s63, %s65
      %p72 = scmp.eq.s32.totalorder %s34, 1
      %p73 = por %p71, %p72
      %p74 = scmp.ne.s32.totalorder %s65, %s66
      %p75 = scmp.eq.s32.totalorder %s34, 0
      %p76 = por %p74, %p75
      %p77 = scmp.ne.s32.totalorder %s65, %s66
      %p78 = scmp.eq.s32.totalorder %s35, 1
      %p79 = por %p77, %p78
      %p81 = scmp.ne.s32.totalorder %s66, %s80
      %p82 = scmp.eq.s32.totalorder %s35, 0
      %p83 = por %p81, %p82
      %s85 = sadd.s32 %s84, 1
      %p88 = scmp.eq.s32.totalorder %s29, 1
      %p89 = scmp.ne.s32.totalorder %s84, %s86
      %p90 = scmp.eq.s32.totalorder %s29, 0
      %p91 = por %p89, %p90
      %p92 = scmp.ne.s32.totalorder %s84, %s86
      %p93 = scmp.eq.s32.totalorder %s34, 1
      %p94 = por %p92, %p93
      %p95 = scmp.ne.s32.totalorder %s86, %s87
      %p96 = scmp.eq.s32.totalorder %s34, 0
      %p97 = por %p95, %p96
      %p98 = scmp.ne.s32.totalorder %s86, %s87
      %p99 = scmp.eq.s32.totalorder %s35, 1
      %p100 = por %p98, %p99
      %p102 = scmp.ne.s32.totalorder %s87, %s101
      %p103 = scmp.eq.s32.totalorder %s35, 0
      %p104 = por %p102, %p103
      %s106 = sadd.s32 %s105, 1
      %p109 = scmp.eq.s32.totalorder %s29, 1
      %p110 = scmp.ne.s32.totalorder %s105, %s107
      %p111 = scmp.eq.s32.totalorder %s29, 0
      %p112 = por %p110, %p111
      %p113 = scmp.ne.s32.totalorder %s105, %s107
      %p114 = scmp.eq.s32.totalorder %s34, 1
      %p115 = por %p113, %p114
      %p116 = scmp.ne.s32.totalorder %s107, %s108
      %p117 = scmp.eq.s32.totalorder %s34, 0
      %p118 = por %p116, %p117
      %p119 = scmp.ne.s32.totalorder %s107, %s108
      %p120 = scmp.eq.s32.totalorder %s35, 1
      %p121 = por %p119, %p120
      %p123 = scmp.ne.s32.totalorder %s108, %s122
      %p124 = scmp.eq.s32.totalorder %s35, 0
      %p125 = por %p123, %p124
      %s127 = sadd.s32 %s126, 1
      %p130 = scmp.eq.s32.totalorder %s29, 1
      %p131 = scmp.ne.s32.totalorder %s126, %s128
      %p132 = scmp.eq.s32.totalorder %s29, 0
      %p133 = por %p131, %p132
      %p134 = scmp.ne.s32.totalorder %s126, %s128
      %p135 = scmp.eq.s32.totalorder %s34, 1
      %p136 = por %p134, %p135
      %p137 = scmp.ne.s32.totalorder %s128, %s129
      %p138 = scmp.eq.s32.totalorder %s34, 0
      %p139 = por %p137, %p138
      %p140 = scmp.ne.s32.totalorder %s128, %s129
      %p141 = scmp.eq.s32.totalorder %s35, 1
      %p142 = por %p140, %p141
      %p144 = scmp.ne.s32.totalorder %s129, %s143
      %p145 = scmp.eq.s32.totalorder %s35, 0
      %p146 = por %p144, %p145
      %s148 = sadd.s32 %s147, 1
      %p151 = scmp.eq.s32.totalorder %s29, 1
      %p152 = scmp.ne.s32.totalorder %s147, %s149
      %p153 = scmp.eq.s32.totalorder %s29, 0
      %p154 = por %p152, %p153
      %p155 = scmp.ne.s32.totalorder %s147, %s149
      %p156 = scmp.eq.s32.totalorder %s34, 1
      %p157 = por %p155, %p156
      %p158 = scmp.ne.s32.totalorder %s149, %s150
      %p159 = scmp.eq.s32.totalorder %s34, 0
      %p160 = por %p158, %p159
      %p161 = scmp.ne.s32.totalorder %s149, %s150
      %p162 = scmp.eq.s32.totalorder %s35, 1
      %p163 = por %p161, %p162
      %p165 = scmp.ne.s32.totalorder %s150, %s164
      %p166 = scmp.eq.s32.totalorder %s35, 0
      %p167 = por %p165, %p166
      %s169 = sadd.s32 %s168, 1
      %p172 = scmp.eq.s32.totalorder %s29, 1
      %p173 = scmp.ne.s32.totalorder %s168, %s170
      %p174 = scmp.eq.s32.totalorder %s29, 0
      %p175 = por %p173, %p174
      %p176 = scmp.ne.s32.totalorder %s168, %s170
      %p177 = scmp.eq.s32.totalorder %s34, 1
      %p178 = por %p176, %p177
      %p179 = scmp.ne.s32.totalorder %s170, %s171
      %p180 = scmp.eq.s32.totalorder %s34, 0
      %p181 = por %p179, %p180
      %p182 = scmp.ne.s32.totalorder %s170, %s171
      %p183 = scmp.eq.s32.totalorder %s35, 1
      %p184 = por %p182, %p183
      %p186 = scmp.ne.s32.totalorder %s171, %s185
      %p187 = scmp.eq.s32.totalorder %s35, 0
      %p188 = por %p186, %p187
      %s190 = sadd.s32 %s189, 1
      %p193 = scmp.eq.s32.totalorder %s29, 1
      %p194 = scmp.ne.s32.totalorder %s189, %s191
      %p195 = scmp.eq.s32.totalorder %s29, 0
      %p196 = por %p194, %p195
      %p197 = scmp.ne.s32.totalorder %s189, %s191
      %p198 = scmp.eq.s32.totalorder %s34, 1
      %p199 = por %p197, %p198
      %p200 = scmp.ne.s32.totalorder %s191, %s192
      %p201 = scmp.eq.s32.totalorder %s34, 0
      %p202 = por %p200, %p201
      %p203 = scmp.ne.s32.totalorder %s191, %s192
      %p204 = scmp.eq.s32.totalorder %s35, 1
      %p205 = por %p203, %p204
      %p207 = scmp.ne.s32.totalorder %s192, %s206
      %p208 = scmp.eq.s32.totalorder %s35, 0
      %p209 = por %p207, %p208
      %s211 = sadd.s32 %s210, 1
      %p214 = scmp.eq.s32.totalorder %s29, 1
      %p215 = scmp.ne.s32.totalorder %s210, %s212
      %p216 = scmp.eq.s32.totalorder %s29, 0
      %p217 = por %p215, %p216
      %p218 = scmp.ne.s32.totalorder %s210, %s212
      %p219 = scmp.eq.s32.totalorder %s34, 1
      %p220 = por %p218, %p219
      %p221 = scmp.ne.s32.totalorder %s212, %s213
      %p222 = scmp.eq.s32.totalorder %s34, 0
      %p223 = por %p221, %p222
      %p224 = scmp.ne.s32.totalorder %s212, %s213
      %p225 = scmp.eq.s32.totalorder %s35, 1
      %p226 = por %p224, %p225
      %p228 = scmp.ne.s32.totalorder %s213, %s227
      %p229 = scmp.eq.s32.totalorder %s35, 0
      %p230 = por %p228, %p229
      %s232 = sadd.s32 %s231, 1
      %p235 = scmp.eq.s32.totalorder %s29, 1
      %p236 = scmp.ne.s32.totalorder %s231, %s233
      %p237 = scmp.eq.s32.totalorder %s29, 0
      %p238 = por %p236, %p237
      %p239 = scmp.ne.s32.totalorder %s231, %s233
      %p240 = scmp.eq.s32.totalorder %s34, 1
      %p241 = por %p239, %p240
      %p242 = scmp.ne.s32.totalorder %s233, %s234
      %p243 = scmp.eq.s32.totalorder %s34, 0
      %p244 = por %p242, %p243
      %p245 = scmp.ne.s32.totalorder %s233, %s234
      %p246 = scmp.eq.s32.totalorder %s35, 1
      %p247 = por %p245, %p246
      %p249 = scmp.ne.s32.totalorder %s234, %s248
      %p250 = scmp.eq.s32.totalorder %s35, 0
      %p251 = por %p249, %p250
      %s253 = sadd.s32 %s252, 1
      %p256 = scmp.eq.s32.totalorder %s29, 1
      %p257 = scmp.ne.s32.totalorder %s252, %s254
      %p258 = scmp.eq.s32.totalorder %s29, 0
      %p259 = por %p257, %p258
      %p260 = scmp.ne.s32.totalorder %s252, %s254
      %p261 = scmp.eq.s32.totalorder %s34, 1
      %p262 = por %p260, %p261
      %p263 = scmp.ne.s32.totalorder %s254, %s255
      %p264 = scmp.eq.s32.totalorder %s34, 0
      %p265 = por %p263, %p264
      %p266 = scmp.ne.s32.totalorder %s254, %s255
      %p267 = scmp.eq.s32.totalorder %s35, 1
      %p268 = por %p266, %p267
      %p270 = scmp.ne.s32.totalorder %s255, %s269
      %p271 = scmp.eq.s32.totalorder %s35, 0
      %p272 = por %p270, %p271
      %s274 = sadd.s32 %s273, 1
      %p277 = scmp.eq.s32.totalorder %s29, 1
      %p278 = scmp.ne.s32.totalorder %s273, %s275
      %p279 = scmp.eq.s32.totalorder %s29, 0
      %p280 = por %p278, %p279
      %p281 = scmp.ne.s32.totalorder %s273, %s275
      %p282 = scmp.eq.s32.totalorder %s34, 1
      %p283 = por %p281, %p282
      %p284 = scmp.ne.s32.totalorder %s275, %s276
      %p285 = scmp.eq.s32.totalorder %s34, 0
      %p286 = por %p284, %p285
      %p287 = scmp.ne.s32.totalorder %s275, %s276
      %p288 = scmp.eq.s32.totalorder %s35, 1
      %p289 = por %p287, %p288
      %p291 = scmp.ne.s32.totalorder %s276, %s290
      %p292 = scmp.eq.s32.totalorder %s35, 0
      %p293 = por %p291, %p292
      %s295 = sadd.s32 %s294, 1
      %p298 = scmp.eq.s32.totalorder %s29, 1
      %p299 = scmp.ne.s32.totalorder %s294, %s296
      %p300 = scmp.eq.s32.totalorder %s29, 0
      %p301 = por %p299, %p300
      %p302 = scmp.ne.s32.totalorder %s294, %s296
      %p303 = scmp.eq.s32.totalorder %s34, 1
      %p304 = por %p302, %p303
      %p305 = scmp.ne.s32.totalorder %s296, %s297
      %p306 = scmp.eq.s32.totalorder %s34, 0
      %p307 = por %p305, %p306
      %p308 = scmp.ne.s32.totalorder %s296, %s297
      %p309 = scmp.eq.s32.totalorder %s35, 1
      %p310 = por %p308, %p309
      %p312 = scmp.ne.s32.totalorder %s297, %s311
      %p313 = scmp.eq.s32.totalorder %s35, 0
      %p314 = por %p312, %p313
      %s316 = sadd.s32 %s315, 1
      %p319 = scmp.eq.s32.totalorder %s29, 1
      %p320 = scmp.ne.s32.totalorder %s315, %s317
      %p321 = scmp.eq.s32.totalorder %s29, 0
      %p322 = por %p320, %p321
      %p323 = scmp.ne.s32.totalorder %s315, %s317
      %p324 = scmp.eq.s32.totalorder %s34, 1
      %p325 = por %p323, %p324
      %p326 = scmp.ne.s32.totalorder %s317, %s318
      %p327 = scmp.eq.s32.totalorder %s34, 0
      %p328 = por %p326, %p327
      %p329 = scmp.ne.s32.totalorder %s317, %s318
      %p330 = scmp.eq.s32.totalorder %s35, 1
      %p331 = por %p329, %p330
      %p333 = scmp.ne.s32.totalorder %s318, %s332
      %p334 = scmp.eq.s32.totalorder %s35, 0
      %p335 = por %p333, %p334
      %s337 = sadd.s32 %s336, 1
      %p340 = scmp.eq.s32.totalorder %s29, 1
      %p341 = scmp.ne.s32.totalorder %s336, %s338
      %p342 = scmp.eq.s32.totalorder %s29, 0
      %p343 = por %p341, %p342
      %p344 = scmp.ne.s32.totalorder %s336, %s338
      %p345 = scmp.eq.s32.totalorder %s34, 1
      %p346 = por %p344, %p345
      %p347 = scmp.ne.s32.totalorder %s338, %s339
      %p348 = scmp.eq.s32.totalorder %s34, 0
      %p349 = por %p347, %p348
      %p350 = scmp.ne.s32.totalorder %s338, %s339
      %p351 = scmp.eq.s32.totalorder %s35, 1
      %p352 = por %p350, %p351
      %p354 = scmp.ne.s32.totalorder %s339, %s353
      %p355 = scmp.eq.s32.totalorder %s35, 0
      %p356 = por %p354, %p355
      %s358 = sadd.s32 %s357, 1
      %p361 = scmp.eq.s32.totalorder %s29, 1
      %p362 = scmp.ne.s32.totalorder %s357, %s359
      %p363 = scmp.eq.s32.totalorder %s29, 0
      %p364 = por %p362, %p363
      %p365 = scmp.ne.s32.totalorder %s357, %s359
      %p366 = scmp.eq.s32.totalorder %s34, 1
      %p367 = por %p365, %p366
      %p368 = scmp.ne.s32.totalorder %s359, %s360
      %p369 = scmp.eq.s32.totalorder %s34, 0
      %p370 = por %p368, %p369
      %p371 = scmp.ne.s32.totalorder %s359, %s360
      %p372 = scmp.eq.s32.totalorder %s35, 1
      %p373 = por %p371, %p372
      %p375 = scmp.ne.s32.totalorder %s360, %s374
      %p376 = scmp.eq.s32.totalorder %s35, 0
      %p377 = por %p375, %p376
      %s379 = sadd.s32 %s378, 1
      %p382 = scmp.eq.s32.totalorder %s29, 1
      %p383 = scmp.ne.s32.totalorder %s378, %s380
      %p384 = scmp.eq.s32.totalorder %s29, 0
      %p385 = por %p383, %p384
      %p386 = scmp.ne.s32.totalorder %s378, %s380
      %p387 = scmp.eq.s32.totalorder %s34, 1
      %p388 = por %p386, %p387
      %p389 = scmp.ne.s32.totalorder %s380, %s381
      %p390 = scmp.eq.s32.totalorder %s34, 0
      %p391 = por %p389, %p390
      %p392 = scmp.ne.s32.totalorder %s380, %s381
      %p393 = scmp.eq.s32.totalorder %s35, 1
      %p394 = por %p392, %p393
      %p396 = scmp.ne.s32.totalorder %s381, %s395
      %p397 = scmp.eq.s32.totalorder %s35, 0
      %p398 = por %p396, %p397
      %s399 = ssub.s32 %s29, %s36
      %p400 = scmp.eq.s32.totalorder %s399, 0
      %s402 = sadd.s32 %s401, 1
      %s403 = scalar_select %p400, %s401, %s402
      %p406 = pneg %p400
      %p407 = scmp.eq.s32.totalorder %s29, 1
      %p408 = por %p406, %p407
      %p409 = scmp.ne.s32.totalorder %s401, %s404
      %p410 = scmp.eq.s32.totalorder %s29, 0
      %p411 = por %p409, %p410
      %p412 = scmp.ne.s32.totalorder %s401, %s404
      %p413 = scmp.eq.s32.totalorder %s34, 1
      %p414 = por %p412, %p413
      %p415 = scmp.ne.s32.totalorder %s404, %s405
      %p416 = scmp.eq.s32.totalorder %s34, 0
      %p417 = por %p415, %p416
      %p418 = scmp.ne.s32.totalorder %s404, %s405
      %p419 = scmp.eq.s32.totalorder %s35, 1
      %p420 = por %p418, %p419
      %p422 = scmp.ne.s32.totalorder %s405, %s421
      %p423 = scmp.eq.s32.totalorder %s35, 0
      %p424 = por %p422, %p423
      %p425 = scmp.le.s32.totalorder 1, %s29
      %p426 = scmp.lt.s32.totalorder %s29, 3
      %p427 = pnand %p425, %p426
      %p428 = pneg %p427
      // Predicated region
      $region9: #{tpu_custom_call.1} parent=5 // pred_check
        _
      $region10: #{tpu_custom_call.1} parent=5 // pred_check_branch
        %430 = sbr.rel (%p427) target = $region12
      $region11: #{tpu_custom_call.1} parent=5 // pred_region
        %s431 = ssub.s32 %s29, 1
        // Predicated region
        $region13: #{tpu_custom_call.1} parent=11 // pred_check
          %p432 = pneg %p76
        $region14: #{tpu_custom_call.1} parent=11 // pred_check_branch
          %434 = sbr.rel (%p432) target = $region16
        $region15: #{tpu_custom_call.1} parent=11 // pred_region
          _
        $region16: #{tpu_custom_call.1} parent=11 // pred_fallthru
          _
        // Predicated region
        $region17: #{tpu_custom_call.1} parent=11 // pred_check
          %p435 = pneg %p97
        $region18: #{tpu_custom_call.1} parent=11 // pred_check_branch
          %437 = sbr.rel (%p435) target = $region20
        $region19: #{tpu_custom_call.1} parent=11 // pred_region
          _
        $region20: #{tpu_custom_call.1} parent=11 // pred_fallthru
          _
        // Predicated region
        $region21: #{tpu_custom_call.1} parent=11 // pred_check
          %p438 = pneg %p118
        $region22: #{tpu_custom_call.1} parent=11 // pred_check_branch
          %440 = sbr.rel (%p438) target = $region24
        $region23: #{tpu_custom_call.1} parent=11 // pred_region
          %s442 = ssub.s32 256, 256
          %443 = vsyncadd [#allocation4], %s442
          %s444 = sshll.u32 [#allocation3], 4
          %s445 = int_to_ptr.vmem [resolvable:$true] %s444
          %450 = dma.hbm_to_vmem [thread:$0]  %s3, 256, %s445, [#allocation4], 64, 64, 4
        $region24: #{tpu_custom_call.1} parent=11 // pred_fallthru
          _
        // Predicated region
        $region25: #{tpu_custom_call.1} parent=11 // pred_check
          %p451 = pneg %p139
        $region26: #{tpu_custom_call.1} parent=11 // pred_check_branch
          %453 = sbr.rel (%p451) target = $region28
        $region27: #{tpu_custom_call.1} parent=11 // pred_region
          _
        $region28: #{tpu_custom_call.1} parent=11 // pred_fallthru
          _
        // Predicated region
        $region29: #{tpu_custom_call.1} parent=11 // pred_check
          %p454 = pneg %p160
        $region30: #{tpu_custom_call.1} parent=11 // pred_check_branch
          %456 = sbr.rel (%p454) target = $region32
        $region31: #{tpu_custom_call.1} parent=11 // pred_region
          _
        $region32: #{tpu_custom_call.1} parent=11 // pred_fallthru
          _
        // Predicated region
        $region33: #{tpu_custom_call.1} parent=11 // pred_check
          %p457 = pneg %p181
        $region34: #{tpu_custom_call.1} parent=11 // pred_check_branch
          %459 = sbr.rel (%p457) target = $region36
        $region35: #{tpu_custom_call.1} parent=11 // pred_region
          %s461 = ssub.s32 16, 16
          %462 = vsyncadd [#allocation7], %s461
          %s464 = sshll.u32 [#allocation6], 4
          %s465 = int_to_ptr.vmem [resolvable:$true] %s464
          %467 = dma.hbm_to_vmem [thread:$0]  %s6, 16, %s465, [#allocation7]
        $region36: #{tpu_custom_call.1} parent=11 // pred_fallthru
          _
        // Predicated region
        $region37: #{tpu_custom_call.1} parent=11 // pred_check
          %p468 = pneg %p202
        $region38: #{tpu_custom_call.1} parent=11 // pred_check_branch
          %470 = sbr.rel (%p468) target = $region40
        $region39: #{tpu_custom_call.1} parent=11 // pred_region
          %s472 = ssub.s32 256, 256
          %473 = vsyncadd [#allocation7], %s472
          %s474 = sshll.u32 [#allocation8], 4
          %s475 = int_to_ptr.vmem [resolvable:$true] %s474
          %480 = dma.hbm_to_vmem [thread:$0]  %s7, 256, %s475, [#allocation7], 64, 64, 4
        $region40: #{tpu_custom_call.1} parent=11 // pred_fallthru
          _
        // Predicated region
        $region41: #{tpu_custom_call.1} parent=11 // pred_check
          %p481 = pneg %p223
        $region42: #{tpu_custom_call.1} parent=11 // pred_check_branch
          %483 = sbr.rel (%p481) target = $region44
        $region43: #{tpu_custom_call.1} parent=11 // pred_region
          %s485 = ssub.s32 16, 16
          %486 = vsyncadd [#allocation10], %s485
          %s488 = sshll.u32 [#allocation9], 4
          %s489 = int_to_ptr.vmem [resolvable:$true] %s488
          %491 = dma.hbm_to_vmem [thread:$0]  %s8, 16, %s489, [#allocation10]
        $region44: #{tpu_custom_call.1} parent=11 // pred_fallthru
          _
        // Predicated region
        $region45: #{tpu_custom_call.1} parent=11 // pred_check
          %p492 = pneg %p244
        $region46: #{tpu_custom_call.1} parent=11 // pred_check_branch
          %494 = sbr.rel (%p492) target = $region48
        $region47: #{tpu_custom_call.1} parent=11 // pred_region
          _
        $region48: #{tpu_custom_call.1} parent=11 // pred_fallthru
          _
        // Predicated region
        $region49: #{tpu_custom_call.1} parent=11 // pred_check
          %p495 = pneg %p265
        $region50: #{tpu_custom_call.1} parent=11 // pred_check_branch
          %497 = sbr.rel (%p495) target = $region52
        $region51: #{tpu_custom_call.1} parent=11 // pred_region
          _
        $region52: #{tpu_custom_call.1} parent=11 // pred_fallthru
          _
        // Predicated region
        $region53: #{tpu_custom_call.1} parent=11 // pred_check
          %p498 = pneg %p286
        $region54: #{tpu_custom_call.1} parent=11 // pred_check_branch
          %500 = sbr.rel (%p498) target = $region56
        $region55: #{tpu_custom_call.1} parent=11 // pred_region
          _
        $region56: #{tpu_custom_call.1} parent=11 // pred_fallthru
          _
        // Predicated region
        $region57: #{tpu_custom_call.1} parent=11 // pred_check
          %p501 = pneg %p307
        $region58: #{tpu_custom_call.1} parent=11 // pred_check_branch
          %503 = sbr.rel (%p501) target = $region60
        $region59: #{tpu_custom_call.1} parent=11 // pred_region
          _
        $region60: #{tpu_custom_call.1} parent=11 // pred_fallthru
          _
        // Predicated region
        $region61: #{tpu_custom_call.1} parent=11 // pred_check
          %p504 = pneg %p328
        $region62: #{tpu_custom_call.1} parent=11 // pred_check_branch
          %506 = sbr.rel (%p504) target = $region64
        $region63: #{tpu_custom_call.1} parent=11 // pred_region
          _
        $region64: #{tpu_custom_call.1} parent=11 // pred_fallthru
          _
        // Predicated region
        $region65: #{tpu_custom_call.1} parent=11 // pred_check
          %p507 = pneg %p349
        $region66: #{tpu_custom_call.1} parent=11 // pred_check_branch
          %509 = sbr.rel (%p507) target = $region68
        $region67: #{tpu_custom_call.1} parent=11 // pred_region
          _
        $region68: #{tpu_custom_call.1} parent=11 // pred_fallthru
          _
        // Predicated region
        $region69: #{tpu_custom_call.1} parent=11 // pred_check
          %p510 = pneg %p370
        $region70: #{tpu_custom_call.1} parent=11 // pred_check_branch
          %512 = sbr.rel (%p510) target = $region72
        $region71: #{tpu_custom_call.1} parent=11 // pred_region
          _
        $region72: #{tpu_custom_call.1} parent=11 // pred_fallthru
          _
        // Predicated region
        $region73: #{tpu_custom_call.1} parent=11 // pred_check
          %p513 = pneg %p391
        $region74: #{tpu_custom_call.1} parent=11 // pred_check_branch
          %515 = sbr.rel (%p513) target = $region76
        $region75: #{tpu_custom_call.1} parent=11 // pred_region
          _
        $region76: #{tpu_custom_call.1} parent=11 // pred_fallthru
          _
      $region12: #{tpu_custom_call.1} parent=5 // pred_fallthru
        _
      %p516 = scmp.lt.s32.totalorder %s29, 2
      // Predicated region
      $region77: #{tpu_custom_call.1} parent=5 // pred_check
        %p517 = pneg %p516
      $region78: #{tpu_custom_call.1} parent=5 // pred_check_branch
        %519 = sbr.rel (%p517) target = $region80
      $region79: #{tpu_custom_call.1} parent=5 // pred_region
        // Predicated region
        $region81: #{tpu_custom_call.1} parent=79 // pred_check
          %p520 = pneg %p49
        $region82: #{tpu_custom_call.1} parent=79 // pred_check_branch
          %522 = sbr.rel (%p520) target = $region84
        $region83: #{tpu_custom_call.1} parent=79 // pred_region
          %p523 = scmp.lt.s32.totalorder %s29, 1
          %s524 = scalar_select %p523, %s29, 1
          %s525 = smul.addr %s524, 8
          %s526 = scalar_lea.vmem %s0, %s525
        $region84: #{tpu_custom_call.1} parent=79 // pred_fallthru
          _
      $region80: #{tpu_custom_call.1} parent=5 // pred_fallthru
        _
      %p527 = scmp.le.s32.totalorder 1, %s29
      %p528 = scmp.lt.s32.totalorder %s29, 3
      %p529 = pnand %p527, %p528
      %p530 = pneg %p529
      // Predicated region
      $region85: #{tpu_custom_call.1} parent=5 // pred_check
        _
      $region86: #{tpu_custom_call.1} parent=5 // pred_check_branch
        %532 = sbr.rel (%p529) target = $region88
      $region87: #{tpu_custom_call.1} parent=5 // pred_region
        %s533 = ssub.s32 %s29, 1
        // Predicated region
        $region89: #{tpu_custom_call.1} parent=87 // pred_check
          %p534 = pneg %p118
        $region90: #{tpu_custom_call.1} parent=87 // pred_check_branch
          %536 = sbr.rel (%p534) target = $region92
        $region91: #{tpu_custom_call.1} parent=87 // pred_region
          %537 = dma.done [#allocation4], 256
        $region92: #{tpu_custom_call.1} parent=87 // pred_fallthru
          _
        // Predicated region
        $region93: #{tpu_custom_call.1} parent=87 // pred_check
          %p538 = pneg %p181
        $region94: #{tpu_custom_call.1} parent=87 // pred_check_branch
          %540 = sbr.rel (%p538) target = $region96
        $region95: #{tpu_custom_call.1} parent=87 // pred_region
          %541 = dma.done [#allocation7], 16
        $region96: #{tpu_custom_call.1} parent=87 // pred_fallthru
          _
        // Predicated region
        $region97: #{tpu_custom_call.1} parent=87 // pred_check
          %p542 = pneg %p202
        $region98: #{tpu_custom_call.1} parent=87 // pred_check_branch
          %544 = sbr.rel (%p542) target = $region100
        $region99: #{tpu_custom_call.1} parent=87 // pred_region
          %545 = dma.done [#allocation7], 256
        $region100: #{tpu_custom_call.1} parent=87 // pred_fallthru
          _
        // Predicated region
        $region101: #{tpu_custom_call.1} parent=87 // pred_check
          %p546 = pneg %p223
        $region102: #{tpu_custom_call.1} parent=87 // pred_check_branch
          %548 = sbr.rel (%p546) target = $region104
        $region103: #{tpu_custom_call.1} parent=87 // pred_region
          %549 = dma.done [#allocation10], 16
        $region104: #{tpu_custom_call.1} parent=87 // pred_fallthru
          _
        %p550 = scmp.lt.s32.totalorder %s34, 1
        %s551 = scalar_select %p550, %s34, 1
        %s552 = smul.addr %s551, 8
        %s553 = scalar_lea.vmem %s0, %s552
        %p554 = pneg %p55
        %p555 = pneg %p52
        %p556 = pneg %p76
        %p557 = pneg %p73
        %p558 = pneg %p97
        %p559 = pneg %p94
        %p560 = pneg %p118
        %p561 = pneg %p115
        %p562 = pneg %p139
        %p563 = pneg %p136
        %p564 = pneg %p160
        %p565 = pneg %p157
        %p566 = pneg %p181
        %p567 = pneg %p178
        %p568 = pneg %p202
        %p569 = pneg %p199
        %p570 = pneg %p223
        %p571 = pneg %p220
        %p572 = pneg %p244
        %p573 = pneg %p241
        %p574 = pneg %p265
        %p575 = pneg %p262
        %p576 = pneg %p286
        %p577 = pneg %p283
        %p578 = pneg %p307
        %p579 = pneg %p304
        %p580 = pneg %p328
        %p581 = pneg %p325
        %p582 = pneg %p349
        %p583 = pneg %p346
        %p584 = pneg %p370
        %p585 = pneg %p367
        %p586 = pneg %p391
        %p587 = pneg %p388
        %p588 = pneg %p417
        %p589 = pneg %p414
        %s590 = sand.u32 %s404, 1
        %s591 = scalar_lea.sflag [#allocation5], %s590
        %s592 = sand.u32 %s404, 1
        %s593 = smul.addr %s592, 8
        %s594 = scalar_lea.vmem [#allocation11], %s593
        %p595 = scmp.lt.s32.totalorder %s34, 1
        %s596 = scalar_select %p595, %s34, 1
        %s597 = smul.addr %s596, 8
        %s598 = scalar_lea.vmem %s0, %s597
        %v600 = vld [vmem:[%s598] sm:$0xff]
        %v601 = vpack.c.bf16 %v600, %v600
        %v602 = vld [vmem:[%s1] sm:$0xf]
        %v603 = vld [vmem:[%s1 + $0x4] sm:$0xf]
        %v604 = vld [vmem:[%s1 + $0x8] sm:$0xf]
        %v605 = vld [vmem:[%s1 + $0xc] sm:$0xf]
        %v606 = vld [vmem:[%s4] sm:$0x1]
        %v608 = vlaneseq
        %v609 = vshrl.u32 %v608, 7
        %v610 = vsub.s32 0, %v609
        %v611 = vrot.slane %v606, %v610
        %v617 = vunpack.c.l.b16 %v602
        %v618 = vunpack.c.l.b16 %v603
        %v619 = vunpack.c.l.b16 %v604
        %v620 = vunpack.c.l.b16 %v605
        %v621 = vpack.c.b16 %v618, %v617
        %v622 = vpack.c.b16 %v620, %v619
        %vm625 = vcmask 261120
        %v627 = vsel %vm625, %v601, 0
        %629 = vmatprep.subr.bf16.mxu0 0
        %630 = vmatpush1.bf16.msra.mxu0 %v621
        %631 = vmatprep.subr.bf16.mxu0 0
        %632 = vmatpush1.bf16.msra.mxu0 %v622
        %633 = vmatprep.subr.bf16.mxu0 0
        %634 = vmatpush1.bf16.msra.mxu0 0
        %635 = vmatprep.subr.bf16.mxu0 0
        %636 = vmatpush1.bf16.msra.mxu0 0
        %637 = vmatprep.subr.bf16.mxu0 0
        %638 = vmatpush1.bf16.msra.mxu0 0
        %639 = vmatprep.subr.bf16.mxu0 0
        %640 = vmatpush1.bf16.msra.mxu0 0
        %641 = vmatprep.subr.bf16.mxu0 0
        %642 = vmatpush1.bf16.msra.mxu0 0
        %643 = vmatprep.subr.bf16.mxu0 0
        %644 = vmatpush1.bf16.msra.mxu0 0
        %645 = vmatprep.subr.bf16.mxu0 0
        %646 = vmatpush1.bf16.msra.mxu0 0
        %647 = vmatprep.subr.bf16.mxu0 0
        %648 = vmatpush1.bf16.msra.mxu0 0
        %649 = vmatprep.subr.bf16.mxu0 0
        %650 = vmatpush1.bf16.msra.mxu0 0
        %651 = vmatprep.subr.bf16.mxu0 0
        %652 = vmatpush1.bf16.msra.mxu0 0
        %653 = vmatprep.subr.bf16.mxu0 0
        %654 = vmatpush1.bf16.msra.mxu0 0
        %655 = vmatprep.subr.bf16.mxu0 0
        %656 = vmatpush1.bf16.msra.mxu0 0
        %657 = vmatprep.subr.bf16.mxu0 0
        %658 = vmatpush1.bf16.msra.mxu0 0
        %659 = vmatprep.subr.bf16.mxu0 0
        %660 = vmatpush1.bf16.msra.mxu0 0
        %661 = vmatprep.mubr.bf16.mxu0 0
        %662 = vmatmul.mubr.bf16.gmra.mrb[0].mxu0 %v627
        %v663 = vpop.f32.mrb[0].mxu0
        %v664 = vadd.f32 %v611, %v663
        %v665 = vpop.f32.mrb[0].mxu0
        %v666 = vpop.f32.mrb[0].mxu0
        %v667 = vpop.f32.mrb[0].mxu0
        %668 = vdwg.mxu0
        %v669 = vmul.f32 %v664, 0.35355338
        %v670 = vpack.c.bf16 %v669, %v669
        %v671 = vld [vmem:[%s2] sm:$0xf]
        %v672 = vld [vmem:[%s2 + $0x4] sm:$0xf]
        %v673 = vld [vmem:[%s2 + $0x8] sm:$0xf]
        %v674 = vld [vmem:[%s2 + $0xc] sm:$0xf]
        %v675 = vld [vmem:[%s5] sm:$0x1]
        %v677 = vlaneseq
        %v678 = vshrl.u32 %v677, 7
        %v679 = vsub.s32 0, %v678
        %v680 = vrot.slane %v675, %v679
        %v686 = vunpack.c.l.b16 %v671
        %v687 = vunpack.c.l.b16 %v672
        %v688 = vunpack.c.l.b16 %v673
        %v689 = vunpack.c.l.b16 %v674
        %v690 = vpack.c.b16 %v687, %v686
        %v691 = vpack.c.b16 %v689, %v688
        %694 = vmatprep.subr.bf16.mxu0 0
        %695 = vmatpush1.bf16.msra.mxu0 %v690
        %696 = vmatprep.subr.bf16.mxu0 0
        %697 = vmatpush1.bf16.msra.mxu0 %v691
        %698 = vmatprep.subr.bf16.mxu0 0
        %699 = vmatpush1.bf16.msra.mxu0 0
        %700 = vmatprep.subr.bf16.mxu0 0
        %701 = vmatpush1.bf16.msra.mxu0 0
        %702 = vmatprep.subr.bf16.mxu0 0
        %703 = vmatpush1.bf16.msra.mxu0 0
        %704 = vmatprep.subr.bf16.mxu0 0
        %705 = vmatpush1.bf16.msra.mxu0 0
        %706 = vmatprep.subr.bf16.mxu0 0
        %707 = vmatpush1.bf16.msra.mxu0 0
        %708 = vmatprep.subr.bf16.mxu0 0
        %709 = vmatpush1.bf16.msra.mxu0 0
        %710 = vmatprep.subr.bf16.mxu0 0
        %711 = vmatpush1.bf16.msra.mxu0 0
        %712 = vmatprep.subr.bf16.mxu0 0
        %713 = vmatpush1.bf16.msra.mxu0 0
        %714 = vmatprep.subr.bf16.mxu0 0
        %715 = vmatpush1.bf16.msra.mxu0 0
        %716 = vmatprep.subr.bf16.mxu0 0
        %717 = vmatpush1.bf16.msra.mxu0 0
        %718 = vmatprep.subr.bf16.mxu0 0
        %719 = vmatpush1.bf16.msra.mxu0 0
        %720 = vmatprep.subr.bf16.mxu0 0
        %721 = vmatpush1.bf16.msra.mxu0 0
        %722 = vmatprep.subr.bf16.mxu0 0
        %723 = vmatpush1.bf16.msra.mxu0 0
        %724 = vmatprep.subr.bf16.mxu0 0
        %725 = vmatpush1.bf16.msra.mxu0 0
        %726 = vmatprep.mubr.bf16.mxu0 0
        %727 = vmatmul.mubr.bf16.gmra.mrb[0].mxu0 %v627
        %v728 = vpop.f32.mrb[0].mxu0
        %v729 = vadd.f32 %v680, %v728
        %v730 = vpop.f32.mrb[0].mxu0
        %v731 = vpop.f32.mrb[0].mxu0
        %v732 = vpop.f32.mrb[0].mxu0
        %733 = vdwg.mxu0
        %v734 = vpack.c.bf16 %v729, %v729
        %v735 = vld [vmem:[#allocation3] sm:$0xf]
        %v736 = vld [vmem:[#allocation3 + $0x4] sm:$0xf]
        %v737 = vld [vmem:[#allocation3 + $0x8] sm:$0xf]
        %v738 = vld [vmem:[#allocation3 + $0xc] sm:$0xf]
        %v739 = vld [vmem:[#allocation6] sm:$0x1]
        %v741 = vlaneseq
        %v742 = vshrl.u32 %v741, 7
        %v743 = vsub.s32 0, %v742
        %v744 = vrot.slane %v739, %v743
        %v750 = vunpack.c.l.b16 %v735
        %v751 = vunpack.c.l.b16 %v736
        %v752 = vunpack.c.l.b16 %v737
        %v753 = vunpack.c.l.b16 %v738
        %v754 = vpack.c.b16 %v751, %v750
        %v755 = vpack.c.b16 %v753, %v752
        %758 = vmatprep.subr.bf16.mxu0 0
        %759 = vmatpush1.bf16.msra.mxu0 %v754
        %760 = vmatprep.subr.bf16.mxu0 0
        %761 = vmatpush1.bf16.msra.mxu0 %v755
        %762 = vmatprep.subr.bf16.mxu0 0
        %763 = vmatpush1.bf16.msra.mxu0 0
        %764 = vmatprep.subr.bf16.mxu0 0
        %765 = vmatpush1.bf16.msra.mxu0 0
        %766 = vmatprep.subr.bf16.mxu0 0
        %767 = vmatpush1.bf16.msra.mxu0 0
        %768 = vmatprep.subr.bf16.mxu0 0
        %769 = vmatpush1.bf16.msra.mxu0 0
        %770 = vmatprep.subr.bf16.mxu0 0
        %771 = vmatpush1.bf16.msra.mxu0 0
        %772 = vmatprep.subr.bf16.mxu0 0
        %773 = vmatpush1.bf16.msra.mxu0 0
        %774 = vmatprep.subr.bf16.mxu0 0
        %775 = vmatpush1.bf16.msra.mxu0 0
        %776 = vmatprep.subr.bf16.mxu0 0
        %777 = vmatpush1.bf16.msra.mxu0 0
        %778 = vmatprep.subr.bf16.mxu0 0
        %779 = vmatpush1.bf16.msra.mxu0 0
        %780 = vmatprep.subr.bf16.mxu0 0
        %781 = vmatpush1.bf16.msra.mxu0 0
        %782 = vmatprep.subr.bf16.mxu0 0
        %783 = vmatpush1.bf16.msra.mxu0 0
        %784 = vmatprep.subr.bf16.mxu0 0
        %785 = vmatpush1.bf16.msra.mxu0 0
        %786 = vmatprep.subr.bf16.mxu0 0
        %787 = vmatpush1.bf16.msra.mxu0 0
        %788 = vmatprep.subr.bf16.mxu0 0
        %789 = vmatpush1.bf16.msra.mxu0 0
        %790 = vmatprep.mubr.bf16.mxu0 0
        %791 = vmatmul.mubr.bf16.gmra.mrb[0].mxu0 %v627
        %v792 = vpop.f32.mrb[0].mxu0
        %v793 = vadd.f32 %v744, %v792
        %v794 = vpop.f32.mrb[0].mxu0
        %v795 = vpop.f32.mrb[0].mxu0
        %v796 = vpop.f32.mrb[0].mxu0
        %797 = vdwg.mxu0
        %v798 = vpack.c.bf16 %v793, %v793
        %v799 = vlaneseq
        %v800 = vshrl.u32 %v799, 7
        %v801 = vlaneseq
        %v802 = vand.u32 %v801, 127
        %vm803 = vcmp.le.s32.totalorder %v802, %v800
        %v804 = vsel %vm803, 0.0, -1e+30
        %vm805 = vcmask 64512
        %v807 = vsel %vm805, %v670, 0
        %v810 = vsel %vm805, %v734, 0
        %812 = vmatprep.subr.bf16.mxu0 0
        %813 = vmatpush1.bf16.xpose.msra.mxu0 %v810
        %814 = vmatprep.subr.bf16.mxu0 0
        %815 = vmatpush1.bf16.xpose.msra.mxu0 0
        %816 = vmatprep.subr.bf16.mxu0 0
        %817 = vmatpush1.bf16.xpose.msra.mxu0 0
        %818 = vmatprep.subr.bf16.mxu0 0
        %819 = vmatpush1.bf16.xpose.msra.mxu0 0
        %820 = vmatprep.subr.bf16.mxu0 0
        %821 = vmatpush1.bf16.xpose.msra.mxu0 0
        %822 = vmatprep.subr.bf16.mxu0 0
        %823 = vmatpush1.bf16.xpose.msra.mxu0 0
        %824 = vmatprep.subr.bf16.mxu0 0
        %825 = vmatpush1.bf16.xpose.msra.mxu0 0
        %826 = vmatprep.subr.bf16.mxu0 0
        %827 = vmatpush1.bf16.xpose.msra.mxu0 0
        %828 = vmatprep.subr.bf16.mxu0 0
        %829 = vmatpush1.bf16.xpose.msra.mxu0 0
        %830 = vmatprep.subr.bf16.mxu0 0
        %831 = vmatpush1.bf16.xpose.msra.mxu0 0
        %832 = vmatprep.subr.bf16.mxu0 0
        %833 = vmatpush1.bf16.xpose.msra.mxu0 0
        %834 = vmatprep.subr.bf16.mxu0 0
        %835 = vmatpush1.bf16.xpose.msra.mxu0 0
        %836 = vmatprep.subr.bf16.mxu0 0
        %837 = vmatpush1.bf16.xpose.msra.mxu0 0
        %838 = vmatprep.subr.bf16.mxu0 0
        %839 = vmatpush1.bf16.xpose.msra.mxu0 0
        %840 = vmatprep.subr.bf16.mxu0 0
        %841 = vmatpush1.bf16.xpose.msra.mxu0 0
        %842 = vmatprep.subr.bf16.mxu0 0
        %843 = vmatpush1.bf16.xpose.msra.mxu0 0
        %844 = vmatprep.mubr.bf16.mxu0 0
        %845 = vmatmul.mubr.bf16.gmra.mrb[0].mxu0 %v807
        %v846 = vpop.f32.mrb[0].mxu0
        %v847 = vadd.f32 %v804, %v846
        %v848 = vpop.f32.mrb[0].mxu0
        %v849 = vpop.f32.mrb[0].mxu0
        %v850 = vpop.f32.mrb[0].mxu0
        %851 = vdwg.mxu0
        %v852 = vsel %vm805, %v847, -inf
        %853 = vmax.xlane.f32.xlu0 %v852
        %v854 = vpop.xlane.xlu0 %853
        %v855 = vsub.f32 %v847, %v854
        %v856 = vmul.f32 %v855, 1.442695
        %v857 = vpow.pop %v856
        %v858 = vsel %vm805, %v857, 0.0
        %859 = vadd.xlane.f32.xlu0 %v858
        %v860 = vpop.xlane.xlu0 %859
        %v861 = vpack.c.bf16 %v857, %v857
        %v863 = vsel %vm805, %v861, 0
        %vm865 = vcmask 1043456
        %v867 = vsel %vm865, %v798, 0
        %869 = vmatprep.subr.bf16.mxu0 0
        %870 = vmatpush1.bf16.msra.mxu0 %v867
        %871 = vmatprep.subr.bf16.mxu0 0
        %872 = vmatpush1.bf16.msra.mxu0 0
        %873 = vmatprep.subr.bf16.mxu0 0
        %874 = vmatpush1.bf16.msra.mxu0 0
        %875 = vmatprep.subr.bf16.mxu0 0
        %876 = vmatpush1.bf16.msra.mxu0 0
        %877 = vmatprep.subr.bf16.mxu0 0
        %878 = vmatpush1.bf16.msra.mxu0 0
        %879 = vmatprep.subr.bf16.mxu0 0
        %880 = vmatpush1.bf16.msra.mxu0 0
        %881 = vmatprep.subr.bf16.mxu0 0
        %882 = vmatpush1.bf16.msra.mxu0 0
        %883 = vmatprep.subr.bf16.mxu0 0
        %884 = vmatpush1.bf16.msra.mxu0 0
        %885 = vmatprep.subr.bf16.mxu0 0
        %886 = vmatpush1.bf16.msra.mxu0 0
        %887 = vmatprep.subr.bf16.mxu0 0
        %888 = vmatpush1.bf16.msra.mxu0 0
        %889 = vmatprep.subr.bf16.mxu0 0
        %890 = vmatpush1.bf16.msra.mxu0 0
        %891 = vmatprep.subr.bf16.mxu0 0
        %892 = vmatpush1.bf16.msra.mxu0 0
        %893 = vmatprep.subr.bf16.mxu0 0
        %894 = vmatpush1.bf16.msra.mxu0 0
        %895 = vmatprep.subr.bf16.mxu0 0
        %896 = vmatpush1.bf16.msra.mxu0 0
        %897 = vmatprep.subr.bf16.mxu0 0
        %898 = vmatpush1.bf16.msra.mxu0 0
        %899 = vmatprep.subr.bf16.mxu0 0
        %900 = vmatpush1.bf16.msra.mxu0 0
        %901 = vmatprep.mubr.bf16.mxu0 0
        %902 = vmatmul.mubr.bf16.gmra.mrb[0].mxu0 %v863
        %v903 = vpop.f32.mrb[0].mxu0
        %v904 = vadd.f32 0.0, %v903
        %v905 = vpop.f32.mrb[0].mxu0
        %v906 = vpop.f32.mrb[0].mxu0
        %v907 = vpop.f32.mrb[0].mxu0
        %908 = vdwg.mxu0
        %v909 = vrcp.pop %v860
        %v910 = vmul.f32 %v904, %v909
        %v911 = vpack.c.bf16 %v910, %v910
        %vm912 = vcmask 60416
        %913 = vst.msk [vmem:[#allocation2] sm:$0xf] %vm912, %v911
        %915 = vrot.lane.b32.xlu0 %v670, 120
        %v916 = vpop.permute.xlu0 %915
        %918 = vrot.lane.b32.xlu0 %v734, 120
        %v919 = vpop.permute.xlu0 %918
        %v921 = vsel %vm805, %v916, 0
        %v924 = vsel %vm805, %v919, 0
        %926 = vmatprep.subr.bf16.mxu0 0
        %927 = vmatpush1.bf16.xpose.msra.mxu0 %v924
        %928 = vmatprep.subr.bf16.mxu0 0
        %929 = vmatpush1.bf16.xpose.msra.mxu0 0
        %930 = vmatprep.subr.bf16.mxu0 0
        %931 = vmatpush1.bf16.xpose.msra.mxu0 0
        %932 = vmatprep.subr.bf16.mxu0 0
        %933 = vmatpush1.bf16.xpose.msra.mxu0 0
        %934 = vmatprep.subr.bf16.mxu0 0
        %935 = vmatpush1.bf16.xpose.msra.mxu0 0
        %936 = vmatprep.subr.bf16.mxu0 0
        %937 = vmatpush1.bf16.xpose.msra.mxu0 0
        %938 = vmatprep.subr.bf16.mxu0 0
        %939 = vmatpush1.bf16.xpose.msra.mxu0 0
        %940 = vmatprep.subr.bf16.mxu0 0
        %941 = vmatpush1.bf16.xpose.msra.mxu0 0
        %942 = vmatprep.subr.bf16.mxu0 0
        %943 = vmatpush1.bf16.xpose.msra.mxu0 0
        %944 = vmatprep.subr.bf16.mxu0 0
        %945 = vmatpush1.bf16.xpose.msra.mxu0 0
        %946 = vmatprep.subr.bf16.mxu0 0
        %947 = vmatpush1.bf16.xpose.msra.mxu0 0
        %948 = vmatprep.subr.bf16.mxu0 0
        %949 = vmatpush1.bf16.xpose.msra.mxu0 0
        %950 = vmatprep.subr.bf16.mxu0 0
        %951 = vmatpush1.bf16.xpose.msra.mxu0 0
        %952 = vmatprep.subr.bf16.mxu0 0
        %953 = vmatpush1.bf16.xpose.msra.mxu0 0
        %954 = vmatprep.subr.bf16.mxu0 0
        %955 = vmatpush1.bf16.xpose.msra.mxu0 0
        %956 = vmatprep.subr.bf16.mxu0 0
        %957 = vmatpush1.bf16.xpose.msra.mxu0 0
        %958 = vmatprep.mubr.bf16.mxu0 0
        %959 = vmatmul.mubr.bf16.gmra.mrb[0].mxu0 %v921
        %v960 = vpop.f32.mrb[0].mxu0
        %v961 = vadd.f32 %v804, %v960
        %v962 = vpop.f32.mrb[0].mxu0
        %v963 = vpop.f32.mrb[0].mxu0
        %v964 = vpop.f32.mrb[0].mxu0
        %965 = vdwg.mxu0
        %v966 = vsel %vm805, %v961, -inf
        %967 = vmax.xlane.f32.xlu0 %v966
        %v968 = vpop.xlane.xlu0 %967
        %v969 = vsub.f32 %v961, %v968
        %v970 = vmul.f32 %v969, 1.442695
        %v971 = vpow.pop %v970
        %v972 = vsel %vm805, %v971, 0.0
        %973 = vadd.xlane.f32.xlu0 %v972
        %v974 = vpop.xlane.xlu0 %973
        %v975 = vpack.c.bf16 %v971, %v971
        %977 = vrot.lane.b32.xlu0 %v798, 120
        %v978 = vpop.permute.xlu0 %977
        %v980 = vsel %vm805, %v975, 0
        %v983 = vsel %vm865, %v978, 0
        %985 = vmatprep.subr.bf16.mxu0 0
        %986 = vmatpush1.bf16.msra.mxu0 %v983
        %987 = vmatprep.subr.bf16.mxu0 0
        %988 = vmatpush1.bf16.msra.mxu0 0
        %989 = vmatprep.subr.bf16.mxu0 0
        %990 = vmatpush1.bf16.msra.mxu0 0
        %991 = vmatprep.subr.bf16.mxu0 0
        %992 = vmatpush1.bf16.msra.mxu0 0
        %993 = vmatprep.subr.bf16.mxu0 0
        %994 = vmatpush1.bf16.msra.mxu0 0
        %995 = vmatprep.subr.bf16.mxu0 0
        %996 = vmatpush1.bf16.msra.mxu0 0
        %997 = vmatprep.subr.bf16.mxu0 0
        %998 = vmatpush1.bf16.msra.mxu0 0
        %999 = vmatprep.subr.bf16.mxu0 0
        %1000 = vmatpush1.bf16.msra.mxu0 0
        %1001 = vmatprep.subr.bf16.mxu0 0
        %1002 = vmatpush1.bf16.msra.mxu0 0
        %1003 = vmatprep.subr.bf16.mxu0 0
        %1004 = vmatpush1.bf16.msra.mxu0 0
        %1005 = vmatprep.subr.bf16.mxu0 0
        %1006 = vmatpush1.bf16.msra.mxu0 0
        %1007 = vmatprep.subr.bf16.mxu0 0
        %1008 = vmatpush1.bf16.msra.mxu0 0
        %1009 = vmatprep.subr.bf16.mxu0 0
        %1010 = vmatpush1.bf16.msra.mxu0 0
        %1011 = vmatprep.subr.bf16.mxu0 0
        %1012 = vmatpush1.bf16.msra.mxu0 0
        %1013 = vmatprep.subr.bf16.mxu0 0
        %1014 = vmatpush1.bf16.msra.mxu0 0
        %1015 = vmatprep.subr.bf16.mxu0 0
        %1016 = vmatpush1.bf16.msra.mxu0 0
        %1017 = vmatprep.mubr.bf16.mxu0 0
        %1018 = vmatmul.mubr.bf16.gmra.mrb[0].mxu0 %v980
        %v1019 = vpop.f32.mrb[0].mxu0
        %v1020 = vadd.f32 0.0, %v1019
        %v1021 = vpop.f32.mrb[0].mxu0
        %v1022 = vpop.f32.mrb[0].mxu0
        %v1023 = vpop.f32.mrb[0].mxu0
        %1024 = vdwg.mxu0
        %v1025 = vrcp.pop %v974
        %v1026 = vmul.f32 %v1020, %v1025
        %v1027 = vpack.c.bf16 %v1026, %v1026
        %v1029 = vunpack.c.l.b16 %v1027
        %v1030 = vpack.c.b16 %v1029, %v1029
        %1031 = vrot.lane.b32.xlu0 %v1030, 8
        %v1032 = vpop.permute.xlu0 %1031
        %vm1034 = vcmask 126016
        %1035 = vst.msk [vmem:[#allocation2] sm:$0xf] %vm1034, %v1032
        %1036 = vrot.lane.b32.xlu0 %v670, 112
        %v1037 = vpop.permute.xlu0 %1036
        %1038 = vrot.lane.b32.xlu0 %v734, 112
        %v1039 = vpop.permute.xlu0 %1038
        %v1041 = vsel %vm805, %v1037, 0
        %v1044 = vsel %vm805, %v1039, 0
        %1046 = vmatprep.subr.bf16.mxu0 0
        %1047 = vmatpush1.bf16.xpose.msra.mxu0 %v1044
        %1048 = vmatprep.subr.bf16.mxu0 0
        %1049 = vmatpush1.bf16.xpose.msra.mxu0 0
        %1050 = vmatprep.subr.bf16.mxu0 0
        %1051 = vmatpush1.bf16.xpose.msra.mxu0 0
        %1052 = vmatprep.subr.bf16.mxu0 0
        %1053 = vmatpush1.bf16.xpose.msra.mxu0 0
        %1054 = vmatprep.subr.bf16.mxu0 0
        %1055 = vmatpush1.bf16.xpose.msra.mxu0 0
        %1056 = vmatprep.subr.bf16.mxu0 0
        %1057 = vmatpush1.bf16.xpose.msra.mxu0 0
        %1058 = vmatprep.subr.bf16.mxu0 0
        %1059 = vmatpush1.bf16.xpose.msra.mxu0 0
        %1060 = vmatprep.subr.bf16.mxu0 0
        %1061 = vmatpush1.bf16.xpose.msra.mxu0 0
        %1062 = vmatprep.subr.bf16.mxu0 0
        %1063 = vmatpush1.bf16.xpose.msra.mxu0 0
        %1064 = vmatprep.subr.bf16.mxu0 0
        %1065 = vmatpush1.bf16.xpose.msra.mxu0 0
        %1066 = vmatprep.subr.bf16.mxu0 0
        %1067 = vmatpush1.bf16.xpose.msra.mxu0 0
        %1068 = vmatprep.subr.bf16.mxu0 0
        %1069 = vmatpush1.bf16.xpose.msra.mxu0 0
        %1070 = vmatprep.subr.bf16.mxu0 0
        %1071 = vmatpush1.bf16.xpose.msra.mxu0 0
        %1072 = vmatprep.subr.bf16.mxu0 0
        %1073 = vmatpush1.bf16.xpose.msra.mxu0 0
        %1074 = vmatprep.subr.bf16.mxu0 0
        %1075 = vmatpush1.bf16.xpose.msra.mxu0 0
        %1076 = vmatprep.subr.bf16.mxu0 0
        %1077 = vmatpush1.bf16.xpose.msra.mxu0 0
        %1078 = vmatprep.mubr.bf16.mxu0 0
        %1079 = vmatmul.mubr.bf16.gmra.mrb[0].mxu0 %v1041
        %v1080 = vpop.f32.mrb[0].mxu0
        %v1081 = vadd.f32 %v804, %v1080
        %v1082 = vpop.f32.mrb[0].mxu0
        %v1083 = vpop.f32.mrb[0].mxu0
        %v1084 = vpop.f32.mrb[0].mxu0
        %1085 = vdwg.mxu0
        %v1086 = vsel %vm805, %v1081, -inf
        %1087 = vmax.xlane.f32.xlu0 %v1086
        %v1088 = vpop.xlane.xlu0 %1087
        %v1089 = vsub.f32 %v1081, %v1088
        %v1090 = vmul.f32 %v1089, 1.442695
        %v1091 = vpow.pop %v1090
        %v1092 = vsel %vm805, %v1091, 0.0
        %1093 = vadd.xlane.f32.xlu0 %v1092
        %v1094 = vpop.xlane.xlu0 %1093
        %v1095 = vpack.c.bf16 %v1091, %v1091
        %1096 = vrot.lane.b32.xlu0 %v798, 112
        %v1097 = vpop.permute.xlu0 %1096
        %v1099 = vsel %vm805, %v1095, 0
        %v1102 = vsel %vm865, %v1097, 0
        %1104 = vmatprep.subr.bf16.mxu0 0
        %1105 = vmatpush1.bf16.msra.mxu0 %v1102
        %1106 = vmatprep.subr.bf16.mxu0 0
        %1107 = vmatpush1.bf16.msra.mxu0 0
        %1108 = vmatprep.subr.bf16.mxu0 0
        %1109 = vmatpush1.bf16.msra.mxu0 0
        %1110 = vmatprep.subr.bf16.mxu0 0
        %1111 = vmatpush1.bf16.msra.mxu0 0
        %1112 = vmatprep.subr.bf16.mxu0 0
        %1113 = vmatpush1.bf16.msra.mxu0 0
        %1114 = vmatprep.subr.bf16.mxu0 0
        %1115 = vmatpush1.bf16.msra.mxu0 0
        %1116 = vmatprep.subr.bf16.mxu0 0
        %1117 = vmatpush1.bf16.msra.mxu0 0
        %1118 = vmatprep.subr.bf16.mxu0 0
        %1119 = vmatpush1.bf16.msra.mxu0 0
        %1120 = vmatprep.subr.bf16.mxu0 0
        %1121 = vmatpush1.bf16.msra.mxu0 0
        %1122 = vmatprep.subr.bf16.mxu0 0
        %1123 = vmatpush1.bf16.msra.mxu0 0
        %1124 = vmatprep.subr.bf16.mxu0 0
        %1125 = vmatpush1.bf16.msra.mxu0 0
        %1126 = vmatprep.subr.bf16.mxu0 0
        %1127 = vmatpush1.bf16.msra.mxu0 0
        %1128 = vmatprep.subr.bf16.mxu0 0
        %1129 = vmatpush1.bf16.msra.mxu0 0
        %1130 = vmatprep.subr.bf16.mxu0 0
        %1131 = vmatpush1.bf16.msra.mxu0 0
        %1132 = vmatprep.subr.bf16.mxu0 0
        %1133 = vmatpush1.bf16.msra.mxu0 0
        %1134 = vmatprep.subr.bf16.mxu0 0
        %1135 = vmatpush1.bf16.msra.mxu0 0
        %1136 = vmatprep.mubr.bf16.mxu0 0
        %1137 = vmatmul.mubr.bf16.gmra.mrb[0].mxu0 %v1099
        %v1138 = vpop.f32.mrb[0].mxu0
        %v1139 = vadd.f32 0.0, %v1138
        %v1140 = vpop.f32.mrb[0].mxu0
        %v1141 = vpop.f32.mrb[0].mxu0
        %v1142 = vpop.f32.mrb[0].mxu0
        %1143 = vdwg.mxu0
        %v1144 = vrcp.pop %v1094
        %v1145 = vmul.f32 %v1139, %v1144
        %v1146 = vpack.c.bf16 %v1145, %v1145
        %v1148 = vunpack.c.l.b16 %v1146
        %v1149 = vpack.c.b16 %v1148, %v1148
        %1150 = vrot.lane.b32.xlu0 %v1149, 16
        %v1151 = vpop.permute.xlu0 %1150
        %vm1153 = vcmask 191616
        %1154 = vst.msk [vmem:[#allocation2] sm:$0xf] %vm1153, %v1151
        %1155 = vrot.lane.b32.xlu0 %v670, 104
        %v1156 = vpop.permute.xlu0 %1155
        %1157 = vrot.lane.b32.xlu0 %v734, 104
        %v1158 = vpop.permute.xlu0 %1157
        %v1160 = vsel %vm805, %v1156, 0
        %v1163 = vsel %vm805, %v1158, 0
        %1165 = vmatprep.subr.bf16.mxu0 0
        %1166 = vmatpush1.bf16.xpose.msra.mxu0 %v1163
        %1167 = vmatprep.subr.bf16.mxu0 0
        %1168 = vmatpush1.bf16.xpose.msra.mxu0 0
        %1169 = vmatprep.subr.bf16.mxu0 0
        %1170 = vmatpush1.bf16.xpose.msra.mxu0 0
        %1171 = vmatprep.subr.bf16.mxu0 0
        %1172 = vmatpush1.bf16.xpose.msra.mxu0 0
        %1173 = vmatprep.subr.bf16.mxu0 0
        %1174 = vmatpush1.bf16.xpose.msra.mxu0 0
        %1175 = vmatprep.subr.bf16.mxu0 0
        %1176 = vmatpush1.bf16.xpose.msra.mxu0 0
        %1177 = vmatprep.subr.bf16.mxu0 0
        %1178 = vmatpush1.bf16.xpose.msra.mxu0 0
        %1179 = vmatprep.subr.bf16.mxu0 0
        %1180 = vmatpush1.bf16.xpose.msra.mxu0 0
        %1181 = vmatprep.subr.bf16.mxu0 0
        %1182 = vmatpush1.bf16.xpose.msra.mxu0 0
        %1183 = vmatprep.subr.bf16.mxu0 0
        %1184 = vmatpush1.bf16.xpose.msra.mxu0 0
        %1185 = vmatprep.subr.bf16.mxu0 0
        %1186 = vmatpush1.bf16.xpose.msra.mxu0 0
        %1187 = vmatprep.subr.bf16.mxu0 0
        %1188 = vmatpush1.bf16.xpose.msra.mxu0 0
        %1189 = vmatprep.subr.bf16.mxu0 0
        %1190 = vmatpush1.bf16.xpose.msra.mxu0 0
        %1191 = vmatprep.subr.bf16.mxu0 0
        %1192 = vmatpush1.bf16.xpose.msra.mxu0 0
        %1193 = vmatprep.subr.bf16.mxu0 0
        %1194 = vmatpush1.bf16.xpose.msra.mxu0 0
        %1195 = vmatprep.subr.bf16.mxu0 0
        %1196 = vmatpush1.bf16.xpose.msra.mxu0 0
        %1197 = vmatprep.mubr.bf16.mxu0 0
        %1198 = vmatmul.mubr.bf16.gmra.mrb[0].mxu0 %v1160
        %v1199 = vpop.f32.mrb[0].mxu0
        %v1200 = vadd.f32 %v804, %v1199
        %v1201 = vpop.f32.mrb[0].mxu0
        %v1202 = vpop.f32.mrb[0].mxu0
        %v1203 = vpop.f32.mrb[0].mxu0
        %1204 = vdwg.mxu0
        %v1205 = vsel %vm805, %v1200, -inf
        %1206 = vmax.xlane.f32.xlu0 %v1205
        %v1207 = vpop.xlane.xlu0 %1206
        %v1208 = vsub.f32 %v1200, %v1207
        %v1209 = vmul.f32 %v1208, 1.442695
        %v1210 = vpow.pop %v1209
        %v1211 = vsel %vm805, %v1210, 0.0
        %1212 = vadd.xlane.f32.xlu0 %v1211
        %v1213 = vpop.xlane.xlu0 %1212
        %v1214 = vpack.c.bf16 %v1210, %v1210
        %1215 = vrot.lane.b32.xlu0 %v798, 104
        %v1216 = vpop.permute.xlu0 %1215
        %v1218 = vsel %vm805, %v1214, 0
        %v1221 = vsel %vm865, %v1216, 0
        %1223 = vmatprep.subr.bf16.mxu0 0
        %1224 = vmatpush1.bf16.msra.mxu0 %v1221
        %1225 = vmatprep.subr.bf16.mxu0 0
        %1226 = vmatpush1.bf16.msra.mxu0 0
        %1227 = vmatprep.subr.bf16.mxu0 0
        %1228 = vmatpush1.bf16.msra.mxu0 0
        %1229 = vmatprep.subr.bf16.mxu0 0
        %1230 = vmatpush1.bf16.msra.mxu0 0
        %1231 = vmatprep.subr.bf16.mxu0 0
        %1232 = vmatpush1.bf16.msra.mxu0 0
        %1233 = vmatprep.subr.bf16.mxu0 0
        %1234 = vmatpush1.bf16.msra.mxu0 0
        %1235 = vmatprep.subr.bf16.mxu0 0
        %1236 = vmatpush1.bf16.msra.mxu0 0
        %1237 = vmatprep.subr.bf16.mxu0 0
        %1238 = vmatpush1.bf16.msra.mxu0 0
        %1239 = vmatprep.subr.bf16.mxu0 0
        %1240 = vmatpush1.bf16.msra.mxu0 0
        %1241 = vmatprep.subr.bf16.mxu0 0
        %1242 = vmatpush1.bf16.msra.mxu0 0
        %1243 = vmatprep.subr.bf16.mxu0 0
        %1244 = vmatpush1.bf16.msra.mxu0 0
        %1245 = vmatprep.subr.bf16.mxu0 0
        %1246 = vmatpush1.bf16.msra.mxu0 0
        %1247 = vmatprep.subr.bf16.mxu0 0
        %1248 = vmatpush1.bf16.msra.mxu0 0
        %1249 = vmatprep.subr.bf16.mxu0 0
        %1250 = vmatpush1.bf16.msra.mxu0 0
        %1251 = vmatprep.subr.bf16.mxu0 0
        %1252 = vmatpush1.bf16.msra.mxu0 0
        %1253 = vmatprep.subr.bf16.mxu0 0
        %1254 = vmatpush1.bf16.msra.mxu0 0
        %1255 = vmatprep.mubr.bf16.mxu0 0
        %1256 = vmatmul.mubr.bf16.gmra.mrb[0].mxu0 %v1218
        %v1257 = vpop.f32.mrb[0].mxu0
        %v1258 = vadd.f32 0.0, %v1257
        %v1259 = vpop.f32.mrb[0].mxu0
        %v1260 = vpop.f32.mrb[0].mxu0
        %v1261 = vpop.f32.mrb[0].mxu0
        %1262 = vdwg.mxu0
        %v1263 = vrcp.pop %v1213
        %v1264 = vmul.f32 %v1258, %v1263
        %v1265 = vpack.c.bf16 %v1264, %v1264
        %v1267 = vunpack.c.l.b16 %v1265
        %v1268 = vpack.c.b16 %v1267, %v1267
        %1269 = vrot.lane.b32.xlu0 %v1268, 24
        %v1270 = vpop.permute.xlu0 %1269
        %vm1272 = vcmask 257216
        %1273 = vst.msk [vmem:[#allocation2] sm:$0xf] %vm1272, %v1270
        %v1274 = vld [vmem:[#allocation2] sm:$0xf]
        %v1275 = vld [vmem:[#allocation8] sm:$0xf]
        %v1276 = vld [vmem:[#allocation8 + $0x4] sm:$0xf]
        %v1277 = vld [vmem:[#allocation8 + $0x8] sm:$0xf]
        %v1278 = vld [vmem:[#allocation8 + $0xc] sm:$0xf]
        %v1279 = vld [vmem:[#allocation9] sm:$0x1]
        %v1281 = vlaneseq
        %v1282 = vshrl.u32 %v1281, 7
        %v1283 = vsub.s32 0, %v1282
        %v1284 = vrot.slane %v1279, %v1283
        %v1290 = vunpack.c.l.b16 %v1275
        %v1291 = vunpack.c.l.b16 %v1276
        %v1292 = vunpack.c.l.b16 %v1277
        %v1293 = vunpack.c.l.b16 %v1278
        %v1294 = vpack.c.b16 %v1291, %v1290
        %v1295 = vpack.c.b16 %v1293, %v1292
        %v1299 = vsel %vm625, %v1274, 0
        %1301 = vmatprep.subr.bf16.mxu0 0
        %1302 = vmatpush1.bf16.msra.mxu0 %v1294
        %1303 = vmatprep.subr.bf16.mxu0 0
        %1304 = vmatpush1.bf16.msra.mxu0 %v1295
        %1305 = vmatprep.subr.bf16.mxu0 0
        %1306 = vmatpush1.bf16.msra.mxu0 0
        %1307 = vmatprep.subr.bf16.mxu0 0
        %1308 = vmatpush1.bf16.msra.mxu0 0
        %1309 = vmatprep.subr.bf16.mxu0 0
        %1310 = vmatpush1.bf16.msra.mxu0 0
        %1311 = vmatprep.subr.bf16.mxu0 0
        %1312 = vmatpush1.bf16.msra.mxu0 0
        %1313 = vmatprep.subr.bf16.mxu0 0
        %1314 = vmatpush1.bf16.msra.mxu0 0
        %1315 = vmatprep.subr.bf16.mxu0 0
        %1316 = vmatpush1.bf16.msra.mxu0 0
        %1317 = vmatprep.subr.bf16.mxu0 0
        %1318 = vmatpush1.bf16.msra.mxu0 0
        %1319 = vmatprep.subr.bf16.mxu0 0
        %1320 = vmatpush1.bf16.msra.mxu0 0
        %1321 = vmatprep.subr.bf16.mxu0 0
        %1322 = vmatpush1.bf16.msra.mxu0 0
        %1323 = vmatprep.subr.bf16.mxu0 0
        %1324 = vmatpush1.bf16.msra.mxu0 0
        %1325 = vmatprep.subr.bf16.mxu0 0
        %1326 = vmatpush1.bf16.msra.mxu0 0
        %1327 = vmatprep.subr.bf16.mxu0 0
        %1328 = vmatpush1.bf16.msra.mxu0 0
        %1329 = vmatprep.subr.bf16.mxu0 0
        %1330 = vmatpush1.bf16.msra.mxu0 0
        %1331 = vmatprep.subr.bf16.mxu0 0
        %1332 = vmatpush1.bf16.msra.mxu0 0
        %1333 = vmatprep.mubr.bf16.mxu0 0
        %1334 = vmatmul.mubr.bf16.gmra.mrb[0].mxu0 %v1299
        %v1335 = vpop.f32.mrb[0].mxu0
        %v1336 = vadd.f32 %v1284, %v1335
        %v1337 = vpop.f32.mrb[0].mxu0
        %v1338 = vpop.f32.mrb[0].mxu0
        %v1339 = vpop.f32.mrb[0].mxu0
        %1340 = vdwg.mxu0
        %v1341 = vadd.f32 %v600, %v1336
        %v1342 = vld [vmem:[%s13] sm:$0x1]
        %v1343 = vld [vmem:[%s14] sm:$0x1]
        %v1344 = vsel %vm625, %v1341, 0.0
        %1345 = vadd.xlane.f32.xlu0 %v1344
        %v1346 = vpop.xlane.xlu0 %1345
        %v1347 = vrcp.pop 32.0
        %v1348 = vmul.f32 %v1346, %v1347
        %v1349 = vsub.f32 %v1341, %v1348
        %v1350 = vmul.f32 %v1349, %v1349
        %v1351 = vsel %vm625, %v1350, 0.0
        %1352 = vadd.xlane.f32.xlu0 %v1351
        %v1353 = vpop.xlane.xlu0 %1352
        %v1354 = vmul.f32 %v1353, %v1347
        %v1355 = vadd.f32 %v1354, 1e-05
        %v1356 = vrsqrt.pop %v1355
        %v1357 = vmul.f32 %v1349, %v1356
        %v1359 = vlaneseq
        %v1360 = vshrl.u32 %v1359, 7
        %v1361 = vsub.s32 0, %v1360
        %v1362 = vrot.slane %v1342, %v1361
        %v1364 = vmul.f32 %v1357, %v1362
        %v1366 = vlaneseq
        %v1367 = vshrl.u32 %v1366, 7
        %v1368 = vsub.s32 0, %v1367
        %v1369 = vrot.slane %v1343, %v1368
        %v1371 = vadd.f32 %v1364, %v1369
        %v1372 = vpack.c.bf16 %v1371, %v1371
        %v1373 = vld [vmem:[%s9] sm:$0xf]
        %v1374 = vld [vmem:[%s9 + $0x4] sm:$0xf]
        %v1375 = vld [vmem:[%s9 + $0x8] sm:$0xf]
        %v1376 = vld [vmem:[%s9 + $0xc] sm:$0xf]
        %v1377 = vld [vmem:[%s10] sm:$0x1]
        %v1379 = vlaneseq
        %v1380 = vshrl.u32 %v1379, 7
        %v1381 = vsub.s32 0, %v1380
        %v1382 = vrot.slane %v1377, %v1381
        %v1388 = vunpack.c.l.b16 %v1373
        %v1389 = vunpack.c.l.b16 %v1374
        %v1390 = vunpack.c.l.b16 %v1375
        %v1391 = vunpack.c.l.b16 %v1376
        %v1392 = vpack.c.b16 %v1389, %v1388
        %v1393 = vpack.c.b16 %v1391, %v1390
        %v1397 = vsel %vm625, %v1372, 0
        %1399 = vmatprep.subr.bf16.mxu0 0
        %1400 = vmatpush1.bf16.msra.mxu0 %v1392
        %1401 = vmatprep.subr.bf16.mxu0 0
        %1402 = vmatpush1.bf16.msra.mxu0 %v1393
        %1403 = vmatprep.subr.bf16.mxu0 0
        %1404 = vmatpush1.bf16.msra.mxu0 0
        %1405 = vmatprep.subr.bf16.mxu0 0
        %1406 = vmatpush1.bf16.msra.mxu0 0
        %1407 = vmatprep.subr.bf16.mxu0 0
        %1408 = vmatpush1.bf16.msra.mxu0 0
        %1409 = vmatprep.subr.bf16.mxu0 0
        %1410 = vmatpush1.bf16.msra.mxu0 0
        %1411 = vmatprep.subr.bf16.mxu0 0
        %1412 = vmatpush1.bf16.msra.mxu0 0
        %1413 = vmatprep.subr.bf16.mxu0 0
        %1414 = vmatpush1.bf16.msra.mxu0 0
        %1415 = vmatprep.subr.bf16.mxu0 0
        %1416 = vmatpush1.bf16.msra.mxu0 0
        %1417 = vmatprep.subr.bf16.mxu0 0
        %1418 = vmatpush1.bf16.msra.mxu0 0
        %1419 = vmatprep.subr.bf16.mxu0 0
        %1420 = vmatpush1.bf16.msra.mxu0 0
        %1421 = vmatprep.subr.bf16.mxu0 0
        %1422 = vmatpush1.bf16.msra.mxu0 0
        %1423 = vmatprep.subr.bf16.mxu0 0
        %1424 = vmatpush1.bf16.msra.mxu0 0
        %1425 = vmatprep.subr.bf16.mxu0 0
        %1426 = vmatpush1.bf16.msra.mxu0 0
        %1427 = vmatprep.subr.bf16.mxu0 0
        %1428 = vmatpush1.bf16.msra.mxu0 0
        %1429 = vmatprep.subr.bf16.mxu0 0
        %1430 = vmatpush1.bf16.msra.mxu0 0
        %1431 = vmatprep.mubr.bf16.mxu0 0
        %1432 = vmatmul.mubr.bf16.gmra.mrb[0].mxu0 %v1397
        %v1433 = vpop.f32.mrb[0].mxu0
        %v1434 = vadd.f32 %v1382, %v1433
        %v1435 = vpop.f32.mrb[0].mxu0
        %v1436 = vpop.f32.mrb[0].mxu0
        %v1437 = vpop.f32.mrb[0].mxu0
        %1438 = vdwg.mxu0
        %v1439 = vmax.f32 %v1434, 0.0
        %v1440 = vpack.c.bf16 %v1439, %v1439
        %v1441 = vld [vmem:[%s11] sm:$0xf]
        %v1442 = vld [vmem:[%s11 + $0x4] sm:$0xf]
        %v1443 = vld [vmem:[%s11 + $0x8] sm:$0xf]
        %v1444 = vld [vmem:[%s11 + $0xc] sm:$0xf]
        %v1445 = vld [vmem:[%s11 + $0x10] sm:$0xf]
        %v1446 = vld [vmem:[%s11 + $0x14] sm:$0xf]
        %v1447 = vld [vmem:[%s11 + $0x18] sm:$0xf]
        %v1448 = vld [vmem:[%s11 + $0x1c] sm:$0xf]
        %v1449 = vld [vmem:[%s12] sm:$0x1]
        %v1451 = vlaneseq
        %v1452 = vshrl.u32 %v1451, 7
        %v1453 = vsub.s32 0, %v1452
        %v1454 = vrot.slane %v1449, %v1453
        %v1464 = vunpack.c.l.b16 %v1441
        %v1465 = vunpack.c.l.b16 %v1442
        %v1466 = vunpack.c.l.b16 %v1443
        %v1467 = vunpack.c.l.b16 %v1444
        %v1468 = vunpack.c.l.b16 %v1445
        %v1469 = vunpack.c.l.b16 %v1446
        %v1470 = vunpack.c.l.b16 %v1447
        %v1471 = vunpack.c.l.b16 %v1448
        %v1472 = vpack.c.b16 %v1465, %v1464
        %v1473 = vpack.c.b16 %v1467, %v1466
        %v1474 = vpack.c.b16 %v1469, %v1468
        %v1475 = vpack.c.b16 %v1471, %v1470
        %vm1480 = vcmask 523264
        %v1482 = vsel %vm1480, %v1440, 0
        %1484 = vmatprep.subr.bf16.mxu0 0
        %1485 = vmatpush1.bf16.msra.mxu0 %v1472
        %1486 = vmatprep.subr.bf16.mxu0 0
        %1487 = vmatpush1.bf16.msra.mxu0 %v1473
        %1488 = vmatprep.subr.bf16.mxu0 0
        %1489 = vmatpush1.bf16.msra.mxu0 %v1474
        %1490 = vmatprep.subr.bf16.mxu0 0
        %1491 = vmatpush1.bf16.msra.mxu0 %v1475
        %1492 = vmatprep.subr.bf16.mxu0 0
        %1493 = vmatpush1.bf16.msra.mxu0 0
        %1494 = vmatprep.subr.bf16.mxu0 0
        %1495 = vmatpush1.bf16.msra.mxu0 0
        %1496 = vmatprep.subr.bf16.mxu0 0
        %1497 = vmatpush1.bf16.msra.mxu0 0
        %1498 = vmatprep.subr.bf16.mxu0 0
        %1499 = vmatpush1.bf16.msra.mxu0 0
        %1500 = vmatprep.subr.bf16.mxu0 0
        %1501 = vmatpush1.bf16.msra.mxu0 0
        %1502 = vmatprep.subr.bf16.mxu0 0
        %1503 = vmatpush1.bf16.msra.mxu0 0
        %1504 = vmatprep.subr.bf16.mxu0 0
        %1505 = vmatpush1.bf16.msra.mxu0 0
        %1506 = vmatprep.subr.bf16.mxu0 0
        %1507 = vmatpush1.bf16.msra.mxu0 0
        %1508 = vmatprep.subr.bf16.mxu0 0
        %1509 = vmatpush1.bf16.msra.mxu0 0
        %1510 = vmatprep.subr.bf16.mxu0 0
        %1511 = vmatpush1.bf16.msra.mxu0 0
        %1512 = vmatprep.subr.bf16.mxu0 0
        %1513 = vmatpush1.bf16.msra.mxu0 0
        %1514 = vmatprep.subr.bf16.mxu0 0
        %1515 = vmatpush1.bf16.msra.mxu0 0
        %1516 = vmatprep.mubr.bf16.mxu0 0
        %1517 = vmatmul.mubr.bf16.gmra.mrb[0].mxu0 %v1482
        %v1518 = vpop.f32.mrb[0].mxu0
        %v1519 = vadd.f32 %v1454, %v1518
        %v1520 = vpop.f32.mrb[0].mxu0
        %v1521 = vpop.f32.mrb[0].mxu0
        %v1522 = vpop.f32.mrb[0].mxu0
        %1523 = vdwg.mxu0
        %v1524 = vadd.f32 %v1371, %v1519
        %v1525 = vld [vmem:[%s15] sm:$0x1]
        %v1526 = vld [vmem:[%s16] sm:$0x1]
        %v1527 = vsel %vm625, %v1524, 0.0
        %1528 = vadd.xlane.f32.xlu0 %v1527
        %v1529 = vpop.xlane.xlu0 %1528
        %v1530 = vmul.f32 %v1529, %v1347
        %v1531 = vsub.f32 %v1524, %v1530
        %v1532 = vmul.f32 %v1531, %v1531
        %v1533 = vsel %vm625, %v1532, 0.0
        %1534 = vadd.xlane.f32.xlu0 %v1533
        %v1535 = vpop.xlane.xlu0 %1534
        %v1536 = vmul.f32 %v1535, %v1347
        %v1537 = vadd.f32 %v1536, 1e-05
        %v1538 = vrsqrt.pop %v1537
        %v1539 = vmul.f32 %v1531, %v1538
        %v1541 = vlaneseq
        %v1542 = vshrl.u32 %v1541, 7
        %v1543 = vsub.s32 0, %v1542
        %v1544 = vrot.slane %v1525, %v1543
        %v1546 = vmul.f32 %v1539, %v1544
        %v1548 = vlaneseq
        %v1549 = vshrl.u32 %v1548, 7
        %v1550 = vsub.s32 0, %v1549
        %v1551 = vrot.slane %v1526, %v1550
        %v1553 = vadd.f32 %v1546, %v1551
        %1554 = vst.msk [vmem:[%s594] sm:$0xff] %vm625, %v1553
        %s1555 = sand.u32 %s404, 1
        %s1556 = scalar_lea.sflag [#allocation5], %s1555
        %s1557 = sand.u32 %s404, 1
        %s1558 = smul.addr %s1557, 8
        %s1559 = scalar_lea.vmem [#allocation11], %s1558
        // Predicated region
        $region105: #{tpu_custom_call.1} parent=87 // pred_check
          %p1560 = pneg %p414
        $region106: #{tpu_custom_call.1} parent=87 // pred_check_branch
          %1562 = sbr.rel (%p1560) target = $region108
        $region107: #{tpu_custom_call.1} parent=87 // pred_region
          %s1564 = ssub.s32 128, 128
          %1565 = vsyncadd %s1556, %s1564
          %s1566 = smul.addr %s34, 128
          %s1567 = scalar_lea.hbm %s17, %s1566
          %s1569 = sshll.u32 %s1559, 4
          %s1570 = int_to_ptr.vmem [resolvable:$true] %s1569
          %1572 = dma.vmem_to_hbm [thread:$0]  %s1570, 128, %s1567, %s1556
        $region108: #{tpu_custom_call.1} parent=87 // pred_fallthru
          _
      $region88: #{tpu_custom_call.1} parent=5 // pred_fallthru
        _
      %p1573 = scmp.le.s32.totalorder 2, %s29
      // Predicated region
      $region109: #{tpu_custom_call.1} parent=5 // pred_check
        %p1574 = pneg %p1573
      $region110: #{tpu_custom_call.1} parent=5 // pred_check_branch
        %1576 = sbr.rel (%p1574) target = $region112
      $region111: #{tpu_custom_call.1} parent=5 // pred_region
        %s1577 = ssub.s32 %s29, 2
        // Predicated region
        $region113: #{tpu_custom_call.1} parent=111 // pred_check
          %p1578 = pneg %p420
        $region114: #{tpu_custom_call.1} parent=111 // pred_check_branch
          %1580 = sbr.rel (%p1578) target = $region116
        $region115: #{tpu_custom_call.1} parent=111 // pred_region
          %s1581 = sand.u32 %s405, 1
          %s1582 = scalar_lea.sflag [#allocation5], %s1581
          %s1583 = sand.u32 %s405, 1
          %s1584 = smul.addr %s1583, 8
          %s1585 = scalar_lea.vmem [#allocation11], %s1584
          %1586 = dma.done %s1582, 128
        $region116: #{tpu_custom_call.1} parent=111 // pred_fallthru
          _
      $region112: #{tpu_custom_call.1} parent=5 // pred_fallthru
        _
    $region6: #{tpu_custom_call.1} parent=1 // loop_footer
      %s33 = sadd.s32 1, %s29
    $region7: #{tpu_custom_call.1} parent=1 // loop_footer_branch
      %28 = sbr.rel target = $region3
    $region8: #{tpu_custom_call.1} parent=1 // loop_exit
      _
    %1587 = vsyncpa [#allocation4], 1
    %s1588 = scalar_lea.sflag [#allocation4], 1
    %1589 = vsyncpa %s1588, 1
    %1590 = vsyncpa [#allocation7], 1
    %1591 = vsyncpa [#allocation10], 1
    %1592 = vsyncpa [#allocation5], 1
    %s1593 = scalar_lea.sflag [#allocation5], 1
    %1594 = vsyncpa %s1593, 1

</llo_original>
